<compile_context>
chip_gen: v7x
topology: tpu7x:2x2x1
jax: 0.10.0
libtpu: 0.0.40
codegen_flags: <defaults>
</compile_context>

<pallas_src>
import functools

import jax
import jax.numpy as jnp
from jax import lax
from jax.experimental import pallas as pl
from jax.experimental.pallas import tpu as pltpu

EPS = 1e-5          # PyTorch BatchNorm1d default eps
NEG = -1e30         # additive mask value for invalid conv positions
LANE = 128
SUBLANE = 8


def _round_up(x, m):
    return (x + m - 1) // m * m


# ---------------------------------------------------------------------------
# Fused kernel: conv (all filter sizes) + BN(folded) + ReLU + max-pool + MLP
# ---------------------------------------------------------------------------
def fused_cnn_kernel(x_ref, wc_ref, mask_ref,
                     w1_ref, b1_ref, w2_ref, b2_ref, w3_ref, b3_ref,
                     out_ref, pooled_ref, *, kmax, l_chunk):
    # x_ref     : (B_t, 1, chunk_win, E)  bf16  pre-chunked input (kmax-1 halo)
    # wc_ref    : (kmax, E, F_pad)        bf16  BN-folded combined conv weights
    # mask_ref  : (l_chunk, F_pad)        fp32  folded conv bias at valid pos, NEG else
    # w1/w2/w3  : bf16 BN-folded FC weights (padded); b1/b2/b3 fp32 biases
    # out_ref   : (B_t, C_pad)            fp32  written on the last chunk only
    # pooled_ref: (B_t, F_pad)            fp32  VMEM scratch, running max over chunks
    c = pl.program_id(1)
    n_c = pl.num_programs(1)
    Fp = wc_ref.shape[2]

    x = x_ref[...][:, 0]                      # (B_t, chunk_win, E), bf16

    # Per-tap accumulated matmul (no materialized im2col); fp32 accumulation.
    acc = jnp.zeros((x.shape[0], l_chunk, Fp), jnp.float32)
    for k in range(kmax):                     # small static unroll over taps
        acc = acc + lax.dot_general(
            x[:, k:k + l_chunk, :], wc_ref[k],
            (((2,), (0,)), ((), ())),
            preferred_element_type=jnp.float32)

    acc = acc + mask_ref[...]                 # folded bias + validity mask
    cmax = jnp.max(acc, axis=1)               # (B_t, F_pad)

    @pl.when(c == 0)
    def _():
        pooled_ref[...] = jnp.full_like(pooled_ref, NEG)

    pooled_ref[...] = jnp.maximum(pooled_ref[...], cmax)

    @pl.when(c == n_c - 1)
    def _():
        pooled = jnp.maximum(pooled_ref[...], 0.0)       # relu(max) == max(relu)
        h = jnp.dot(pooled.astype(jnp.bfloat16), w1_ref[...],
                    preferred_element_type=jnp.float32) + b1_ref[...]
        h = jnp.maximum(h, 0.0)
        h = jnp.dot(h.astype(jnp.bfloat16), w2_ref[...],
                    preferred_element_type=jnp.float32) + b2_ref[...]
        h = jnp.maximum(h, 0.0)
        out_ref[...] = (jnp.dot(h.astype(jnp.bfloat16), w3_ref[...],
                                preferred_element_type=jnp.float32)
                        + b3_ref[...]).astype(out_ref.dtype)


# ---------------------------------------------------------------------------
# Host-side preprocessing: fold BN + biases, combine filter banks, pad, bf16
# ---------------------------------------------------------------------------
def build_fused_params(params, L):
    convs = params["convs"]
    filter_sizes = [c["w"].shape[0] for c in convs]
    E = convs[0]["w"].shape[1]
    kmax = max(filter_sizes)
    fmin = min(filter_sizes)

    F_total = sum(c["w"].shape[2] for c in convs)
    F_pad = _round_up(max(F_total, LANE), LANE)

    # Uniform conv output length shared by all filter sizes (tail handled by
    # the mask); chunked along an 'arbitrary' grid axis, l_chunk capped at 256
    # so the per-step accumulator fits v7x's 64 MiB VMEM.
    l_out = L - fmin + 1          # assumes L >= max(filter_sizes)
    l_out_pad = _round_up(l_out, SUBLANE)
    if l_out_pad > 256:
        l_chunk = 256
        l_out_pad = _round_up(l_out_pad, l_chunk)
    else:
        l_chunk = l_out_pad
    n_chunks = l_out_pad // l_chunk
    chunk_win = _round_up(l_chunk + kmax - 1, SUBLANE)

    Wc = jnp.zeros((kmax, E, F_pad), jnp.float32)
    mask = jnp.zeros((l_out_pad, F_pad), jnp.float32)
    pos = jnp.arange(l_out_pad)[:, None]

    col = 0
    for c, f in zip(convs, filter_sizes):
        Fi = c["w"].shape[2]
        scale = c["g"] * lax.rsqrt(c["v"] + EPS)                  # (1, Fi)
        w_f = (c["w"] * scale).astype(jnp.float32)                # (f, E, Fi)
        b_f = ((c["b"] - c["m"]) * scale + c["be"]).astype(jnp.float32)
        Wc = Wc.at[:f, :, col:col + Fi].set(w_f)                  # missing taps stay 0
        valid = pos < (L - f + 1)                                 # (l_out_pad, 1)
        # Conv bias folded into the mask (valid positions get the bias,
        # invalid positions get NEG).
        mask = mask.at[:, col:col + Fi].set(jnp.where(valid, b_f, NEG))
        col += Fi

    p = params["fc"]
    H1 = p["w1"].shape[1]
    H2 = p["w2"].shape[1]
    C = p["w3"].shape[1]
    H1_pad = _round_up(max(H1, LANE), LANE)
    H2_pad = _round_up(max(H2, LANE), LANE)
    C_pad = _round_up(max(C, LANE), LANE)

    s1 = p["g1"] * lax.rsqrt(p["v1"] + EPS)
    w1f = p["w1"] * s1
    b1f = (p["b1"] - p["m1"]) * s1 + p["be1"]
    s2 = p["g2"] * lax.rsqrt(p["v2"] + EPS)
    w2f = p["w2"] * s2
    b2f = (p["b2"] - p["m2"]) * s2 + p["be2"]

    def pad2(a, r, cdim, dtype):
        out = jnp.zeros((r, cdim), dtype)
        return out.at[:a.shape[0], :a.shape[1]].set(a.astype(dtype))

    return dict(
        kmax=kmax, l_out_pad=l_out_pad, l_chunk=l_chunk, n_chunks=n_chunks,
        chunk_win=chunk_win, E=E, C=C, F_pad=F_pad,
        Wc=Wc.astype(jnp.bfloat16), mask=mask,
        W1=pad2(w1f, F_pad, H1_pad, jnp.bfloat16),
        B1=pad2(b1f, 1, H1_pad, jnp.float32),
        W2=pad2(w2f, H1_pad, H2_pad, jnp.bfloat16),
        B2=pad2(b2f, 1, H2_pad, jnp.float32),
        W3=pad2(p["w3"], H2_pad, C_pad, jnp.bfloat16),
        B3=pad2(p["b3"], 1, C_pad, jnp.float32),
    )


def _choose_b_tile(B, chunk_win, l_chunk, E, F_pad, H1p, H2p, Cp, kmax,
                   budget=32 << 20):
    """Pick the largest sublane-aligned batch tile that fits the VMEM budget."""
    const_bytes = 2 * (kmax * E * F_pad * 2          # Wc (bf16, double-buffered)
                       + l_chunk * F_pad * 4         # mask block (fp32)
                       + F_pad * H1p * 2 + H1p * 4
                       + H1p * H2p * 2 + H2p * 4
                       + H2p * Cp * 2 + Cp * 4)
    b8 = _round_up(B, SUBLANE)
    for cand in (128, 64, 32, 16, 8):
        bt = min(cand, b8)
        per_step = (2 * bt * chunk_win * E * 2       # x chunk (bf16, double-buffered)
                    + bt * l_chunk * F_pad * 4       # conv fp32 accumulator
                    + bt * F_pad * 4                 # pooled scratch
                    + 2 * bt * Cp * 4)               # output block
        if const_bytes + per_step <= budget or bt <= SUBLANE:
            return bt
    return SUBLANE


# ---------------------------------------------------------------------------
# Full forward (single pallas_call)
# ---------------------------------------------------------------------------
def cnn_model_bert_forward(x, params):
    B, L, E = x.shape
    fp = build_fused_params(params, L)
    assert fp["E"] == E

    F_pad = fp["F_pad"]
    H1_pad = fp["W1"].shape[1]
    H2_pad = fp["W2"].shape[1]
    C_pad = fp["W3"].shape[1]
    l_chunk, n_chunks, chunk_win, kmax = (fp["l_chunk"], fp["n_chunks"],
                                          fp["chunk_win"], fp["kmax"])

    B_tile = _choose_b_tile(B, chunk_win, l_chunk, E, F_pad,
                            H1_pad, H2_pad, C_pad, kmax)
    B_pad = _round_up(B, B_tile)

    # Pre-chunked, bf16 x: (B_pad, n_chunks, chunk_win, E); chunk c holds rows
    # [c*l_chunk, c*l_chunk + chunk_win) (kmax-1 halo + sublane pad), so each
    # grid step only DMAs its own chunk.
    # (For E < 128 the lane axis is under-filled; for real BERT E=768 it is
    #  lane-dense.  TODO(synk): pack a factor of L into lanes when E < 128.)
    L_need = (n_chunks - 1) * l_chunk + chunk_win
    x_pad = jnp.zeros((B_pad, L_need, E), jnp.bfloat16)
    x_pad = x_pad.at[:B, :L, :].set(x.astype(jnp.bfloat16))
    x_chunks = jnp.stack(
        [x_pad[:, c * l_chunk:c * l_chunk + chunk_win, :] for c in range(n_chunks)],
        axis=1)

    grid = (B_pad // B_tile, n_chunks)
    kern = functools.partial(fused_cnn_kernel, kmax=kmax, l_chunk=l_chunk)
    const2 = lambda b, c: (0, 0)      # weights / biases stay VMEM-resident

    out = pl.pallas_call(
        kern,
        out_shape=jax.ShapeDtypeStruct((B_pad, C_pad), jnp.float32),
        grid_spec=pltpu.PrefetchScalarGridSpec(
            num_scalar_prefetch=0,
            grid=grid,
            in_specs=[
                pl.BlockSpec((B_tile, 1, chunk_win, E), lambda b, c: (b, c, 0, 0)),
                pl.BlockSpec(fp["Wc"].shape, lambda b, c: (0, 0, 0)),
                pl.BlockSpec((l_chunk, F_pad), lambda b, c: (c, 0)),
                pl.BlockSpec(fp["W1"].shape, const2),
                pl.BlockSpec(fp["B1"].shape, const2),
                pl.BlockSpec(fp["W2"].shape, const2),
                pl.BlockSpec(fp["B2"].shape, const2),
                pl.BlockSpec(fp["W3"].shape, const2),
                pl.BlockSpec(fp["B3"].shape, const2),
            ],
            out_specs=pl.BlockSpec((B_tile, C_pad), lambda b, c: (b, 0)),
            scratch_shapes=[pltpu.VMEM((B_tile, F_pad), jnp.float32)],
        ),
        compiler_params=pltpu.CompilerParams(
            dimension_semantics=("parallel", "arbitrary"),
            vmem_limit_bytes=48 * 1024 * 1024),
    )(x_chunks, fp["Wc"], fp["mask"], fp["W1"], fp["B1"],
      fp["W2"], fp["B2"], fp["W3"], fp["B3"])

    return out[:B, :fp["C"]]


# ---------------------------------------------------------------------------
# Pure-JAX reference (unfused / unfolded, fp32, for correctness check only)
# ---------------------------------------------------------------------------
def _bn_eval(x, gamma, beta, mean, var):
    return (x - mean) * lax.rsqrt(var + EPS) * gamma + beta


def reference_forward(x, params):
    pooled = []
    for c in params["convs"]:
        f = c["w"].shape[0]
        l_out = x.shape[1] - f + 1
        acc = jnp.zeros((x.shape[0], l_out, c["w"].shape[2]), jnp.float32)
        for k in range(f):
            acc = acc + jnp.einsum("blc,cf->blf", x[:, k:k + l_out, :], c["w"][k])
        acc = acc + c["b"]
        y = _bn_eval(acc, c["g"], c["be"], c["m"], c["v"])
        pooled.append(jnp.max(jnp.maximum(y, 0.0), axis=1))
    h = jnp.concatenate(pooled, axis=1)
    p = params["fc"]
    h = jnp.maximum(_bn_eval(jnp.dot(h, p["w1"]) + p["b1"],
                             p["g1"], p["be1"], p["m1"], p["v1"]), 0.0)
    h = jnp.maximum(_bn_eval(jnp.dot(h, p["w2"]) + p["b2"],
                             p["g2"], p["be2"], p["m2"], p["v2"]), 0.0)
    return jnp.dot(h, p["w3"]) + p["b3"]


# ---------------------------------------------------------------------------
# Deterministic parameter construction (synthetic, mirrors module shapes)
# ---------------------------------------------------------------------------
def make_params(key, embed_dim, filter_sizes, num_filters_per_size,
                num_classes, hidden_dim_fc1, hidden_dim_fc2):
    keys = jax.random.split(key, 16)
    convs = []
    for i, (f, nf) in enumerate(zip(filter_sizes, num_filters_per_size)):
        kw, kb, kg, kbe, km, kv = jax.random.split(keys[i], 6)
        convs.append(dict(
            w=0.1 * jax.random.normal(kw, (f, embed_dim, nf), jnp.float32),
            b=0.1 * jax.random.normal(kb, (1, nf), jnp.float32),
            g=1.0 + 0.1 * jax.random.normal(kg, (1, nf), jnp.float32),
            be=0.1 * jax.random.normal(kbe, (1, nf), jnp.float32),
            m=0.1 * jax.random.normal(km, (1, nf), jnp.float32),
            v=0.5 + jax.random.uniform(kv, (1, nf), jnp.float32),
        ))
    total_filters = sum(num_filters_per_size)

    def lin(k, din, dout):
        kw, kb = jax.random.split(k)
        return (0.1 * jax.random.normal(kw, (din, dout), jnp.float32),
                0.1 * jax.random.normal(kb, (1, dout), jnp.float32))

    def bn(k, d):
        kg, kbe, km, kv = jax.random.split(k, 4)
        return (1.0 + 0.1 * jax.random.normal(kg, (1, d), jnp.float32),
                0.1 * jax.random.normal(kbe, (1, d), jnp.float32),
                0.1 * jax.random.normal(km, (1, d), jnp.float32),
                0.5 + jax.random.uniform(kv, (1, d), jnp.float32))

    w1, b1 = lin(keys[10], total_filters, hidden_dim_fc1)
    g1, be1, m1, v1 = bn(keys[11], hidden_dim_fc1)
    w2, b2 = lin(keys[12], hidden_dim_fc1, hidden_dim_fc2)
    g2, be2, m2, v2 = bn(keys[13], hidden_dim_fc2)
    w3, b3 = lin(keys[14], hidden_dim_fc2, num_classes)

    fc = dict(w1=w1, b1=b1, g1=g1, be1=be1, m1=m1, v1=v1,
              w2=w2, b2=b2, g2=g2, be2=be2, m2=m2, v2=v2,
              w3=w3, b3=b3)
    return dict(convs=convs, fc=fc)


if __name__ == "__main__":
    # Small shapes consistent with the module.
    B, L, E = 2, 16, 32
    filter_sizes = [3, 4, 5]
    num_filters_per_size = [8, 8, 8]
    num_classes = 4
    hidden_fc1, hidden_fc2 = 16, 16

    key = jax.random.PRNGKey(0)
    kx, kp = jax.random.split(key)
    x = jax.random.normal(kx, (B, L, E), jnp.float32)   # (batch, seq, embed) == x_ids
    params = make_params(kp, E, filter_sizes, num_filters_per_size,
                         num_classes, hidden_fc1, hidden_fc2)

    # TODO(synk): Dropout is omitted (eval-mode identity); training-mode RNG dropout
    # would use pltpu.prng_seed/prng_random_bits inside the kernel.
    logits = cnn_model_bert_forward(x, params)
    logits = jax.block_until_ready(logits)

    ref = reference_forward(x, params)
    assert logits.shape == (B, num_classes), logits.shape
    # bf16 matmul inputs (fp32 accumulation) -> loosened tolerance vs fp32 ref.
    assert jnp.allclose(logits, ref, atol=5e-2, rtol=5e-2), (logits, ref)

    print("KERNEL_OK")
</pallas_src>

<mosaic_0001>
module attributes {stable_mosaic.version = 11 : i64} {
  func.func @fused_cnn_kernel(%arg0: i32, %arg1: i32, %arg2: memref<8x1x24x32xbf16, #tpu.memory_space<vmem>>, %arg3: memref<5x32x128xbf16, #tpu.memory_space<vmem>>, %arg4: memref<16x128xf32, #tpu.memory_space<vmem>>, %arg5: memref<128x128xbf16, #tpu.memory_space<vmem>>, %arg6: memref<1x128xf32, #tpu.memory_space<vmem>>, %arg7: memref<128x128xbf16, #tpu.memory_space<vmem>>, %arg8: memref<1x128xf32, #tpu.memory_space<vmem>>, %arg9: memref<128x128xbf16, #tpu.memory_space<vmem>>, %arg10: memref<1x128xf32, #tpu.memory_space<vmem>>, %arg11: memref<8x128xf32, #tpu.memory_space<vmem>>, %arg12: memref<8x128xf32, #tpu.memory_space<vmem>>) attributes {dimension_semantics = [#tpu.dimension_semantics<parallel>, #tpu.dimension_semantics<arbitrary>], iteration_bounds = array<i64: 1, 1>, scalar_prefetch = 0 : i64, scratch_operands = 1 : i64, tpu.core_type = #tpu.core_type<tc>, window_params = [{transform_indices = @transform_0, window_bounds = array<i64: 8, 1, 24, 32>}, {pipeline_mode = #tpu.pipeline_mode<synchronous>, transform_indices = @transform_1, window_bounds = array<i64: 5, 32, 128>}, {transform_indices = @transform_2, window_bounds = array<i64: 16, 128>}, {pipeline_mode = #tpu.pipeline_mode<synchronous>, transform_indices = @transform_3, window_bounds = array<i64: 128, 128>}, {pipeline_mode = #tpu.pipeline_mode<synchronous>, transform_indices = @transform_4, window_bounds = array<i64: 1, 128>}, {pipeline_mode = #tpu.pipeline_mode<synchronous>, transform_indices = @transform_5, window_bounds = array<i64: 128, 128>}, {pipeline_mode = #tpu.pipeline_mode<synchronous>, transform_indices = @transform_6, window_bounds = array<i64: 1, 128>}, {pipeline_mode = #tpu.pipeline_mode<synchronous>, transform_indices = @transform_7, window_bounds = array<i64: 128, 128>}, {pipeline_mode = #tpu.pipeline_mode<synchronous>, transform_indices = @transform_8, window_bounds = array<i64: 1, 128>}, {transform_indices = @transform_9, window_bounds = array<i64: 8, 128>}]} {
    %c0 = arith.constant 0 : index
    %c0_0 = arith.constant 0 : index
    %c0_1 = arith.constant 0 : index
    %c0_2 = arith.constant 0 : index
    %0 = vector.load %arg2[%c0, %c0_0, %c0_1, %c0_2] : memref<8x1x24x32xbf16, #tpu.memory_space<vmem>>, vector<8x1x24x32xbf16>
    %1 = vector.shape_cast %0 : vector<8x1x24x32xbf16> to vector<8x24x32xbf16>
    %cst = arith.constant 0.000000e+00 : f32
    %2 = vector.broadcast %cst : f32 to vector<8x16x128xf32>
    %3 = vector.extract_strided_slice %1 {offsets = [0, 0, 0], sizes = [8, 16, 32], strides = [1, 1, 1]} : vector<8x24x32xbf16> to vector<8x16x32xbf16>
    %c0_3 = arith.constant 0 : index
    %c0_4 = arith.constant 0 : index
    %c0_5 = arith.constant 0 : index
    %4 = vector.load %arg3[%c0_3, %c0_4, %c0_5] : memref<5x32x128xbf16, #tpu.memory_space<vmem>>, vector<1x32x128xbf16>
    %5 = vector.shape_cast %4 : vector<1x32x128xbf16> to vector<32x128xbf16>
    %cst_6 = arith.constant dense<0.000000e+00> : vector<8x16x128xf32>
    %6 = tpu.matmul %3, %5, %cst_6 {dimension_numbers = #tpu.dot_dimension_numbers<[2], [0], [0, 1], [1], [0, 0, 0, 1, 1, 1], [], []>} : vector<8x16x32xbf16>, vector<32x128xbf16>, vector<8x16x128xf32> -> vector<8x16x128xf32>
    %7 = arith.addf %2, %6 : vector<8x16x128xf32>
    %8 = vector.extract_strided_slice %1 {offsets = [0, 1, 0], sizes = [8, 16, 32], strides = [1, 1, 1]} : vector<8x24x32xbf16> to vector<8x16x32xbf16>
    %c1 = arith.constant 1 : index
    %c0_7 = arith.constant 0 : index
    %c0_8 = arith.constant 0 : index
    %9 = vector.load %arg3[%c1, %c0_7, %c0_8] : memref<5x32x128xbf16, #tpu.memory_space<vmem>>, vector<1x32x128xbf16>
    %10 = vector.shape_cast %9 : vector<1x32x128xbf16> to vector<32x128xbf16>
    %cst_9 = arith.constant dense<0.000000e+00> : vector<8x16x128xf32>
    %11 = tpu.matmul %8, %10, %cst_9 {dimension_numbers = #tpu.dot_dimension_numbers<[2], [0], [0, 1], [1], [0, 0, 0, 1, 1, 1], [], []>} : vector<8x16x32xbf16>, vector<32x128xbf16>, vector<8x16x128xf32> -> vector<8x16x128xf32>
    %12 = arith.addf %7, %11 : vector<8x16x128xf32>
    %13 = vector.extract_strided_slice %1 {offsets = [0, 2, 0], sizes = [8, 16, 32], strides = [1, 1, 1]} : vector<8x24x32xbf16> to vector<8x16x32xbf16>
    %c2 = arith.constant 2 : index
    %c0_10 = arith.constant 0 : index
    %c0_11 = arith.constant 0 : index
    %14 = vector.load %arg3[%c2, %c0_10, %c0_11] : memref<5x32x128xbf16, #tpu.memory_space<vmem>>, vector<1x32x128xbf16>
    %15 = vector.shape_cast %14 : vector<1x32x128xbf16> to vector<32x128xbf16>
    %cst_12 = arith.constant dense<0.000000e+00> : vector<8x16x128xf32>
    %16 = tpu.matmul %13, %15, %cst_12 {dimension_numbers = #tpu.dot_dimension_numbers<[2], [0], [0, 1], [1], [0, 0, 0, 1, 1, 1], [], []>} : vector<8x16x32xbf16>, vector<32x128xbf16>, vector<8x16x128xf32> -> vector<8x16x128xf32>
    %17 = arith.addf %12, %16 : vector<8x16x128xf32>
    %18 = vector.extract_strided_slice %1 {offsets = [0, 3, 0], sizes = [8, 16, 32], strides = [1, 1, 1]} : vector<8x24x32xbf16> to vector<8x16x32xbf16>
    %c3 = arith.constant 3 : index
    %c0_13 = arith.constant 0 : index
    %c0_14 = arith.constant 0 : index
    %19 = vector.load %arg3[%c3, %c0_13, %c0_14] : memref<5x32x128xbf16, #tpu.memory_space<vmem>>, vector<1x32x128xbf16>
    %20 = vector.shape_cast %19 : vector<1x32x128xbf16> to vector<32x128xbf16>
    %cst_15 = arith.constant dense<0.000000e+00> : vector<8x16x128xf32>
    %21 = tpu.matmul %18, %20, %cst_15 {dimension_numbers = #tpu.dot_dimension_numbers<[2], [0], [0, 1], [1], [0, 0, 0, 1, 1, 1], [], []>} : vector<8x16x32xbf16>, vector<32x128xbf16>, vector<8x16x128xf32> -> vector<8x16x128xf32>
    %22 = arith.addf %17, %21 : vector<8x16x128xf32>
    %23 = vector.extract_strided_slice %1 {offsets = [0, 4, 0], sizes = [8, 16, 32], strides = [1, 1, 1]} : vector<8x24x32xbf16> to vector<8x16x32xbf16>
    %c4 = arith.constant 4 : index
    %c0_16 = arith.constant 0 : index
    %c0_17 = arith.constant 0 : index
    %24 = vector.load %arg3[%c4, %c0_16, %c0_17] : memref<5x32x128xbf16, #tpu.memory_space<vmem>>, vector<1x32x128xbf16>
    %25 = vector.shape_cast %24 : vector<1x32x128xbf16> to vector<32x128xbf16>
    %cst_18 = arith.constant dense<0.000000e+00> : vector<8x16x128xf32>
    %26 = tpu.matmul %23, %25, %cst_18 {dimension_numbers = #tpu.dot_dimension_numbers<[2], [0], [0, 1], [1], [0, 0, 0, 1, 1, 1], [], []>} : vector<8x16x32xbf16>, vector<32x128xbf16>, vector<8x16x128xf32> -> vector<8x16x128xf32>
    %27 = arith.addf %22, %26 : vector<8x16x128xf32>
    %c0_19 = arith.constant 0 : index
    %c0_20 = arith.constant 0 : index
    %28 = vector.load %arg4[%c0_19, %c0_20] : memref<16x128xf32, #tpu.memory_space<vmem>>, vector<16x128xf32>
    %29 = vector.shape_cast %28 : vector<16x128xf32> to vector<1x16x128xf32>
    %30 = vector.broadcast %29 : vector<1x16x128xf32> to vector<8x16x128xf32>
    %31 = arith.addf %27, %30 : vector<8x16x128xf32>
    %cst_21 = arith.constant dense<0xFF800000> : vector<8x128xf32>
    %32 = vector.multi_reduction <maximumf>, %31, %cst_21 [1] : vector<8x16x128xf32> to vector<8x128xf32>
    %c0_i32 = arith.constant 0 : i32
    %33 = arith.cmpi eq, %arg1, %c0_i32 : i32
    %34 = arith.extui %33 : i1 to i32
    %c0_i32_22 = arith.constant 0 : i32
    %35 = arith.cmpi ne, %34, %c0_i32_22 : i32
    scf.if %35 {
      %cst_29 = arith.constant -1.000000e+30 : f32
      %42 = vector.broadcast %cst_29 : f32 to vector<8x128xf32>
      %c0_30 = arith.constant 0 : index
      %c0_31 = arith.constant 0 : index
      %43 = vector.load %arg12[%c0_30, %c0_31] : memref<8x128xf32, #tpu.memory_space<vmem>>, vector<8x128xf32>
      tpu.vector_store %arg12[%c0_30, %c0_31], %42 {strides = array<i32>} : memref<8x128xf32, #tpu.memory_space<vmem>>, vector<8x128xf32>,
    } else {
    }
    %c0_23 = arith.constant 0 : index
    %c0_24 = arith.constant 0 : index
    %36 = vector.load %arg12[%c0_23, %c0_24] : memref<8x128xf32, #tpu.memory_space<vmem>>, vector<8x128xf32>
    %37 = arith.maximumf %36, %32 : vector<8x128xf32>
    %c0_25 = arith.constant 0 : index
    %c0_26 = arith.constant 0 : index
    %38 = vector.load %arg12[%c0_25, %c0_26] : memref<8x128xf32, #tpu.memory_space<vmem>>, vector<8x128xf32>
    tpu.vector_store %arg12[%c0_25, %c0_26], %37 {strides = array<i32>} : memref<8x128xf32, #tpu.memory_space<vmem>>, vector<8x128xf32>,
    %c0_i32_27 = arith.constant 0 : i32
    %39 = arith.cmpi eq, %arg1, %c0_i32_27 : i32
    %40 = arith.extui %39 : i1 to i32
    %c0_i32_28 = arith.constant 0 : i32
    %41 = arith.cmpi ne, %40, %c0_i32_28 : i32
    scf.if %41 {
      %c0_29 = arith.constant 0 : index
      %c0_30 = arith.constant 0 : index
      %42 = vector.load %arg12[%c0_29, %c0_30] : memref<8x128xf32, #tpu.memory_space<vmem>>, vector<8x128xf32>
      %cst_31 = arith.constant 0.000000e+00 : f32
      %43 = vector.broadcast %cst_31 : f32 to vector<8x128xf32>
      %44 = arith.maximumf %42, %43 : vector<8x128xf32>
      %45 = arith.truncf %44 : vector<8x128xf32> to vector<8x128xbf16>
      %c0_32 = arith.constant 0 : index
      %c0_33 = arith.constant 0 : index
      %46 = vector.load %arg5[%c0_32, %c0_33] : memref<128x128xbf16, #tpu.memory_space<vmem>>, vector<128x128xbf16>
      %cst_34 = arith.constant dense<0.000000e+00> : vector<8x128xf32>
      %47 = tpu.matmul %45, %46, %cst_34 {dimension_numbers = #tpu.dot_dimension_numbers<[1], [0], [0], [1], [0, 0, 1, 1], [], []>} : vector<8x128xbf16>, vector<128x128xbf16>, vector<8x128xf32> -> vector<8x128xf32>
      %c0_35 = arith.constant 0 : index
      %c0_36 = arith.constant 0 : index
      %48 = vector.load %arg6[%c0_35, %c0_36] : memref<1x128xf32, #tpu.memory_space<vmem>>, vector<1x128xf32>
      %49 = vector.broadcast %48 : vector<1x128xf32> to vector<8x128xf32>
      %50 = arith.addf %47, %49 : vector<8x128xf32>
      %cst_37 = arith.constant 0.000000e+00 : f32
      %51 = vector.broadcast %cst_37 : f32 to vector<8x128xf32>
      %52 = arith.maximumf %50, %51 : vector<8x128xf32>
      %53 = arith.truncf %52 : vector<8x128xf32> to vector<8x128xbf16>
      %c0_38 = arith.constant 0 : index
      %c0_39 = arith.constant 0 : index
      %54 = vector.load %arg7[%c0_38, %c0_39] : memref<128x128xbf16, #tpu.memory_space<vmem>>, vector<128x128xbf16>
      %cst_40 = arith.constant dense<0.000000e+00> : vector<8x128xf32>
      %55 = tpu.matmul %53, %54, %cst_40 {dimension_numbers = #tpu.dot_dimension_numbers<[1], [0], [0], [1], [0, 0, 1, 1], [], []>} : vector<8x128xbf16>, vector<128x128xbf16>, vector<8x128xf32> -> vector<8x128xf32>
      %c0_41 = arith.constant 0 : index
      %c0_42 = arith.constant 0 : index
      %56 = vector.load %arg8[%c0_41, %c0_42] : memref<1x128xf32, #tpu.memory_space<vmem>>, vector<1x128xf32>
      %57 = vector.broadcast %56 : vector<1x128xf32> to vector<8x128xf32>
      %58 = arith.addf %55, %57 : vector<8x128xf32>
      %cst_43 = arith.constant 0.000000e+00 : f32
      %59 = vector.broadcast %cst_43 : f32 to vector<8x128xf32>
      %60 = arith.maximumf %58, %59 : vector<8x128xf32>
      %61 = arith.truncf %60 : vector<8x128xf32> to vector<8x128xbf16>
      %c0_44 = arith.constant 0 : index
      %c0_45 = arith.constant 0 : index
      %62 = vector.load %arg9[%c0_44, %c0_45] : memref<128x128xbf16, #tpu.memory_space<vmem>>, vector<128x128xbf16>
      %cst_46 = arith.constant dense<0.000000e+00> : vector<8x128xf32>
      %63 = tpu.matmul %61, %62, %cst_46 {dimension_numbers = #tpu.dot_dimension_numbers<[1], [0], [0], [1], [0, 0, 1, 1], [], []>} : vector<8x128xbf16>, vector<128x128xbf16>, vector<8x128xf32> -> vector<8x128xf32>
      %c0_47 = arith.constant 0 : index
      %c0_48 = arith.constant 0 : index
      %64 = vector.load %arg10[%c0_47, %c0_48] : memref<1x128xf32, #tpu.memory_space<vmem>>, vector<1x128xf32>
      %65 = vector.broadcast %64 : vector<1x128xf32> to vector<8x128xf32>
      %66 = arith.addf %63, %65 : vector<8x128xf32>
      %c0_49 = arith.constant 0 : index
      %c0_50 = arith.constant 0 : index
      %67 = vector.load %arg11[%c0_49, %c0_50] : memref<8x128xf32, #tpu.memory_space<vmem>>, vector<8x128xf32>
      tpu.vector_store %arg11[%c0_49, %c0_50], %66 {strides = array<i32>} : memref<8x128xf32, #tpu.memory_space<vmem>>, vector<8x128xf32>,
    } else {
    }
    return
  }
  func.func @transform_0(%arg0: i32, %arg1: i32) -> (i32, i32, i32, i32) {
    %c0_i32 = arith.constant 0 : i32
    %c0_i32_0 = arith.constant 0 : i32
    %c0_i32_1 = arith.constant 0 : i32
    return %arg0, %arg1, %c0_i32, %c0_i32_0 : i32, i32, i32, i32
  }
  func.func @transform_1(%arg0: i32, %arg1: i32) -> (i32, i32, i32) {
    %c0_i32 = arith.constant 0 : i32
    %c0_i32_0 = arith.constant 0 : i32
    %c0_i32_1 = arith.constant 0 : i32
    %c0_i32_2 = arith.constant 0 : i32
    return %c0_i32, %c0_i32_0, %c0_i32_1 : i32, i32, i32
  }
  func.func @transform_2(%arg0: i32, %arg1: i32) -> (i32, i32) {
    %c0_i32 = arith.constant 0 : i32
    %c0_i32_0 = arith.constant 0 : i32
    return %arg1, %c0_i32 : i32, i32
  }
  func.func @transform_3(%arg0: i32, %arg1: i32) -> (i32, i32) {
    %c0_i32 = arith.constant 0 : i32
    %c0_i32_0 = arith.constant 0 : i32
    %c0_i32_1 = arith.constant 0 : i32
    return %c0_i32, %c0_i32_0 : i32, i32
  }
  func.func @transform_4(%arg0: i32, %arg1: i32) -> (i32, i32) {
    %c0_i32 = arith.constant 0 : i32
    %c0_i32_0 = arith.constant 0 : i32
    %c0_i32_1 = arith.constant 0 : i32
    return %c0_i32, %c0_i32_0 : i32, i32
  }
  func.func @transform_5(%arg0: i32, %arg1: i32) -> (i32, i32) {
    %c0_i32 = arith.constant 0 : i32
    %c0_i32_0 = arith.constant 0 : i32
    %c0_i32_1 = arith.constant 0 : i32
    return %c0_i32, %c0_i32_0 : i32, i32
  }
  func.func @transform_6(%arg0: i32, %arg1: i32) -> (i32, i32) {
    %c0_i32 = arith.constant 0 : i32
    %c0_i32_0 = arith.constant 0 : i32
    %c0_i32_1 = arith.constant 0 : i32
    return %c0_i32, %c0_i32_0 : i32, i32
  }
  func.func @transform_7(%arg0: i32, %arg1: i32) -> (i32, i32) {
    %c0_i32 = arith.constant 0 : i32
    %c0_i32_0 = arith.constant 0 : i32
    %c0_i32_1 = arith.constant 0 : i32
    return %c0_i32, %c0_i32_0 : i32, i32
  }
  func.func @transform_8(%arg0: i32, %arg1: i32) -> (i32, i32) {
    %c0_i32 = arith.constant 0 : i32
    %c0_i32_0 = arith.constant 0 : i32
    %c0_i32_1 = arith.constant 0 : i32
    return %c0_i32, %c0_i32_0 : i32, i32
  }
  func.func @transform_9(%arg0: i32, %arg1: i32) -> (i32, i32) {
    %c0_i32 = arith.constant 0 : i32
    %c0_i32_0 = arith.constant 0 : i32
    return %arg0, %c0_i32 : i32, i32
  }
}

</mosaic_0001>

<llo_original>
// kernel: tpu_custom_call.1
$region0: #{tpu_custom_call.1}
  #allocation0 [shape = 'u32[]', space=smem, size = 0x4, offset = 0x4, fixed_abs, tag = 'smem constant byte address 0x4 - core index']
  #allocation1 [shape = 'u32[144,128]{1,0:T(1,128)}', space=vmem, size = 0x12000, scoped, tag = 'internal scratch']
  #allocation2 [shape = 'f32[8,128]{1,0:T(8,128)}', space=vmem, size = 0x1000, scoped, tag = 'scratch operand']
  %s0 = inlined_call_operand.hbm [shape: bf16[8,1,24,32], index: 0, kind: input, shape index: {}]
  %s1 = inlined_call_operand.hbm [shape: bf16[5,32,128], index: 1, kind: input, shape index: {}]
  %s2 = inlined_call_operand.hbm [shape: f32[16,128], index: 2, kind: input, shape index: {}]
  %s3 = inlined_call_operand.hbm [shape: bf16[128,128], index: 3, kind: input, shape index: {}]
  %s4 = inlined_call_operand.vmem [shape: f32[1,128], index: 4, kind: input, shape index: {}]
  %s5 = inlined_call_operand.hbm [shape: bf16[128,128], index: 5, kind: input, shape index: {}]
  %s6 = inlined_call_operand.vmem [shape: f32[1,128], index: 6, kind: input, shape index: {}]
  %s7 = inlined_call_operand.hbm [shape: bf16[128,128], index: 7, kind: input, shape index: {}]
  %s8 = inlined_call_operand.vmem [shape: f32[1,128], index: 8, kind: input, shape index: {}]
  %s9 = inlined_call_operand.hbm [shape: f32[8,128], index: 9, kind: output, shape index: {}]
  %s10 = sld [smem:[#allocation0]]
  $region78: #{tpu_custom_call.1} parent=0
    _
  %s12 = ssub.s32 1, %s10
  %s13 = scalar_select 0, %s12, %s10
  $region1: #{tpu_custom_call.1} parent=0
    #allocation3 [shape = 'u8[49152]{0}', space=vmem, size = 0xc000, scoped, tag = 'input window, operand 0, single buffered']
    #allocation4 [shape = 's32[1]{0}', space=sflag, size = 0x4, scoped, tag = 'scoped memory for tpu_custom_call.1']
    #allocation5 [shape = 's32[1]{0}', space=sflag, size = 0x4, scoped, tag = 'scoped memory for tpu_custom_call.1']
    #allocation6 [shape = 'u8[40960]{0}', space=vmem, size = 0xa000, scoped, tag = 'input window, operand 1, single buffered']
    #allocation7 [shape = 's32[1]{0}', space=sflag, size = 0x4, scoped, tag = 'scoped memory for tpu_custom_call.1']
    #allocation8 [shape = 'u8[8192]{0}', space=vmem, size = 0x2000, scoped, tag = 'input window, operand 2, single buffered']
    #allocation9 [shape = 'u8[32768]{0}', space=vmem, size = 0x8000, scoped, tag = 'input window, operand 3, single buffered']
    #allocation10 [shape = 's32[1]{0}', space=sflag, size = 0x4, scoped, tag = 'scoped memory for tpu_custom_call.1']
    #allocation11 [shape = 'u8[32768]{0}', space=vmem, size = 0x8000, scoped, tag = 'input window, operand 5, single buffered']
    #allocation12 [shape = 'u8[32768]{0}', space=vmem, size = 0x8000, scoped, tag = 'input window, operand 7, single buffered']
    #allocation13 [shape = 's32[1]{0}', space=sflag, size = 0x4, scoped, tag = 'scoped memory for tpu_custom_call.1']
    #allocation14 [shape = 'u8[4096]{0}', space=vmem, size = 0x1000, scoped, tag = 'output window, operand 0, single buffered']
    %14 = vsyncpa [#allocation4], 0
    %15 = vsyncpa [#allocation7], 0
    %16 = vsyncpa [#allocation10], 0
    %17 = vsyncpa [#allocation13], 0
    %18 = vsyncpa [#allocation5], 0
    // Predicated region
    $region2: #{tpu_custom_call.1} parent=1 // pred_check
      _
    $region3: #{tpu_custom_call.1} parent=1 // pred_check_branch
      %20 = sbr.rel (0) target = $region5
    $region4: #{tpu_custom_call.1} parent=1 // pred_region
      %s22 = ssub.s32 1536, 1536
      %23 = vsyncadd [#allocation4], %s22
      %s24 = sshll.u32 [#allocation3], 4
      %s25 = int_to_ptr.vmem [resolvable:$true] %s24
      %30 = dma.hbm_to_vmem [thread:$0]  %s0, 1536, %s25, [#allocation4], 64, 64, 4
    $region5: #{tpu_custom_call.1} parent=1 // pred_fallthru
      _
    // Predicated region
    $region6: #{tpu_custom_call.1} parent=1 // pred_check
      _
    $region7: #{tpu_custom_call.1} parent=1 // pred_check_branch
      %32 = sbr.rel (0) target = $region9
    $region8: #{tpu_custom_call.1} parent=1 // pred_region
      %s34 = ssub.s32 1280, 1280
      %35 = vsyncadd [#allocation7], %s34
      %s36 = sshll.u32 [#allocation6], 4
      %s37 = int_to_ptr.vmem [resolvable:$true] %s36
      %42 = dma.hbm_to_vmem [thread:$0]  %s1, 1280, %s37, [#allocation7], 64, 64, 4
    $region9: #{tpu_custom_call.1} parent=1 // pred_fallthru
      _
    // Predicated region
    $region10: #{tpu_custom_call.1} parent=1 // pred_check
      _
    $region11: #{tpu_custom_call.1} parent=1 // pred_check_branch
      %44 = sbr.rel (0) target = $region13
    $region12: #{tpu_custom_call.1} parent=1 // pred_region
      %s46 = ssub.s32 256, 256
      %47 = vsyncadd [#allocation7], %s46
      %s48 = sshll.u32 [#allocation8], 4
      %s49 = int_to_ptr.vmem [resolvable:$true] %s48
      %54 = dma.hbm_to_vmem [thread:$0]  %s2, 256, %s49, [#allocation7], 128, 128, 8
    $region13: #{tpu_custom_call.1} parent=1 // pred_fallthru
      _
    // Predicated region
    $region14: #{tpu_custom_call.1} parent=1 // pred_check
      _
    $region15: #{tpu_custom_call.1} parent=1 // pred_check_branch
      %56 = sbr.rel (0) target = $region17
    $region16: #{tpu_custom_call.1} parent=1 // pred_region
      %s58 = ssub.s32 1024, 1024
      %59 = vsyncadd [#allocation10], %s58
      %s60 = sshll.u32 [#allocation9], 4
      %s61 = int_to_ptr.vmem [resolvable:$true] %s60
      %66 = dma.hbm_to_vmem [thread:$0]  %s3, 1024, %s61, [#allocation10], 64, 64, 4
    $region17: #{tpu_custom_call.1} parent=1 // pred_fallthru
      _
    // Predicated region
    $region18: #{tpu_custom_call.1} parent=1 // pred_check
      _
    $region19: #{tpu_custom_call.1} parent=1 // pred_check_branch
      %68 = sbr.rel (0) target = $region21
    $region20: #{tpu_custom_call.1} parent=1 // pred_region
      _
    $region21: #{tpu_custom_call.1} parent=1 // pred_fallthru
      _
    // Predicated region
    $region22: #{tpu_custom_call.1} parent=1 // pred_check
      _
    $region23: #{tpu_custom_call.1} parent=1 // pred_check_branch
      %70 = sbr.rel (0) target = $region25
    $region24: #{tpu_custom_call.1} parent=1 // pred_region
      %s72 = ssub.s32 1024, 1024
      %73 = vsyncadd [#allocation10], %s72
      %s74 = sshll.u32 [#allocation11], 4
      %s75 = int_to_ptr.vmem [resolvable:$true] %s74
      %80 = dma.hbm_to_vmem [thread:$0]  %s5, 1024, %s75, [#allocation10], 64, 64, 4
    $region25: #{tpu_custom_call.1} parent=1 // pred_fallthru
      _
    // Predicated region
    $region26: #{tpu_custom_call.1} parent=1 // pred_check
      _
    $region27: #{tpu_custom_call.1} parent=1 // pred_check_branch
      %82 = sbr.rel (0) target = $region29
    $region28: #{tpu_custom_call.1} parent=1 // pred_region
      _
    $region29: #{tpu_custom_call.1} parent=1 // pred_fallthru
      _
    // Predicated region
    $region30: #{tpu_custom_call.1} parent=1 // pred_check
      _
    $region31: #{tpu_custom_call.1} parent=1 // pred_check_branch
      %84 = sbr.rel (0) target = $region33
    $region32: #{tpu_custom_call.1} parent=1 // pred_region
      %s86 = ssub.s32 1024, 1024
      %87 = vsyncadd [#allocation13], %s86
      %s88 = sshll.u32 [#allocation12], 4
      %s89 = int_to_ptr.vmem [resolvable:$true] %s88
      %94 = dma.hbm_to_vmem [thread:$0]  %s7, 1024, %s89, [#allocation13], 64, 64, 4
    $region33: #{tpu_custom_call.1} parent=1 // pred_fallthru
      _
    // Predicated region
    $region34: #{tpu_custom_call.1} parent=1 // pred_check
      _
    $region35: #{tpu_custom_call.1} parent=1 // pred_check_branch
      %96 = sbr.rel (0) target = $region37
    $region36: #{tpu_custom_call.1} parent=1 // pred_region
      _
    $region37: #{tpu_custom_call.1} parent=1 // pred_fallthru
      _
    // Predicated region
    $region38: #{tpu_custom_call.1} parent=1 // pred_check
      _
    $region39: #{tpu_custom_call.1} parent=1 // pred_check_branch
      %98 = sbr.rel (0) target = $region41
    $region40: #{tpu_custom_call.1} parent=1 // pred_region
      %99 = dma.done [#allocation4], 1536
    $region41: #{tpu_custom_call.1} parent=1 // pred_fallthru
      _
    // Predicated region
    $region42: #{tpu_custom_call.1} parent=1 // pred_check
      _
    $region43: #{tpu_custom_call.1} parent=1 // pred_check_branch
      %101 = sbr.rel (0) target = $region45
    $region44: #{tpu_custom_call.1} parent=1 // pred_region
      %102 = dma.done [#allocation7], 1280
    $region45: #{tpu_custom_call.1} parent=1 // pred_fallthru
      _
    // Predicated region
    $region46: #{tpu_custom_call.1} parent=1 // pred_check
      _
    $region47: #{tpu_custom_call.1} parent=1 // pred_check_branch
      %104 = sbr.rel (0) target = $region49
    $region48: #{tpu_custom_call.1} parent=1 // pred_region
      %105 = dma.done [#allocation7], 256
    $region49: #{tpu_custom_call.1} parent=1 // pred_fallthru
      _
    // Predicated region
    $region50: #{tpu_custom_call.1} parent=1 // pred_check
      _
    $region51: #{tpu_custom_call.1} parent=1 // pred_check_branch
      %107 = sbr.rel (0) target = $region53
    $region52: #{tpu_custom_call.1} parent=1 // pred_region
      %108 = dma.done [#allocation10], 1024
    $region53: #{tpu_custom_call.1} parent=1 // pred_fallthru
      _
    // Predicated region
    $region54: #{tpu_custom_call.1} parent=1 // pred_check
      _
    $region55: #{tpu_custom_call.1} parent=1 // pred_check_branch
      %110 = sbr.rel (0) target = $region57
    $region56: #{tpu_custom_call.1} parent=1 // pred_region
      %111 = dma.done [#allocation10], 1024
    $region57: #{tpu_custom_call.1} parent=1 // pred_fallthru
      _
    // Predicated region
    $region58: #{tpu_custom_call.1} parent=1 // pred_check
      _
    $region59: #{tpu_custom_call.1} parent=1 // pred_check_branch
      %113 = sbr.rel (0) target = $region61
    $region60: #{tpu_custom_call.1} parent=1 // pred_region
      %114 = dma.done [#allocation13], 1024
    $region61: #{tpu_custom_call.1} parent=1 // pred_fallthru
      _
    %v116 = vld [vmem:[#allocation3] sm:$0xf]
    %v117 = vld [vmem:[#allocation3 + $0x4] sm:$0xf]
    %v118 = vld [vmem:[#allocation3 + $0x8] sm:$0xf]
    %v119 = vld [vmem:[#allocation3 + $0xc] sm:$0xf]
    %v120 = vld [vmem:[#allocation3 + $0x10] sm:$0xf]
    %v121 = vld [vmem:[#allocation3 + $0x14] sm:$0xf]
    %v122 = vld [vmem:[#allocation3 + $0x18] sm:$0xf]
    %v123 = vld [vmem:[#allocation3 + $0x1c] sm:$0xf]
    %v124 = vld [vmem:[#allocation3 + $0x20] sm:$0xf]
    %v125 = vld [vmem:[#allocation3 + $0x24] sm:$0xf]
    %v126 = vld [vmem:[#allocation3 + $0x28] sm:$0xf]
    %v127 = vld [vmem:[#allocation3 + $0x2c] sm:$0xf]
    %v128 = vld [vmem:[#allocation3 + $0x30] sm:$0xf]
    %v129 = vld [vmem:[#allocation3 + $0x34] sm:$0xf]
    %v130 = vld [vmem:[#allocation3 + $0x38] sm:$0xf]
    %v131 = vld [vmem:[#allocation3 + $0x3c] sm:$0xf]
    %v132 = vld [vmem:[#allocation3 + $0x40] sm:$0xf]
    %v133 = vld [vmem:[#allocation3 + $0x44] sm:$0xf]
    %v134 = vld [vmem:[#allocation3 + $0x48] sm:$0xf]
    %v135 = vld [vmem:[#allocation3 + $0x4c] sm:$0xf]
    %v136 = vld [vmem:[#allocation3 + $0x50] sm:$0xf]
    %v137 = vld [vmem:[#allocation3 + $0x54] sm:$0xf]
    %v138 = vld [vmem:[#allocation3 + $0x58] sm:$0xf]
    %v139 = vld [vmem:[#allocation3 + $0x5c] sm:$0xf]
    %v140 = vld [vmem:[#allocation6] sm:$0xf]
    %v141 = vld [vmem:[#allocation6 + $0x4] sm:$0xf]
    %v142 = vld [vmem:[#allocation6 + $0x8] sm:$0xf]
    %v143 = vld [vmem:[#allocation6 + $0xc] sm:$0xf]
    %s144 = scalar_lea.vmem [#allocation6], 16
    %v145 = vld [vmem:[%s144] sm:$0xf]
    %v146 = vld [vmem:[%s144 + $0x4] sm:$0xf]
    %v147 = vld [vmem:[%s144 + $0x8] sm:$0xf]
    %v148 = vld [vmem:[%s144 + $0xc] sm:$0xf]
    %vm149 = vsmask.f32 3328
    %vm150 = vsmask.f32 7440
    %vm151 = vmor %vm149, %vm150
    %v153 = vshrl.u32 %v116, 16
    %v155 = vrot.slane %v153, 4
    %v156 = vshll.u32 %v116, 16
    %v158 = vrot.slane %v156, 5
    %v159 = vor.u32 %v155, %v158
    %v160 = vrot.slane %v159, 4
    %v162 = vshll.u32 %v117, 16
    %v164 = vrot.slane %v162, 5
    %v165 = vsel %vm151, %v160, %v164
    %v166 = vshrl.u32 %v117, 16
    %v168 = vrot.slane %v166, 4
    %v169 = vor.u32 %v168, %v164
    %v170 = vrot.slane %v169, 4
    %v172 = vshll.u32 %v118, 16
    %v174 = vrot.slane %v172, 5
    %v175 = vsel %vm151, %v170, %v174
    %v177 = vshrl.u32 %v119, 16
    %v179 = vrot.slane %v177, 4
    %v180 = vshll.u32 %v119, 16
    %v182 = vrot.slane %v180, 5
    %v183 = vor.u32 %v179, %v182
    %v184 = vrot.slane %v183, 4
    %v186 = vshll.u32 %v120, 16
    %v188 = vrot.slane %v186, 5
    %v189 = vsel %vm151, %v184, %v188
    %v190 = vshrl.u32 %v120, 16
    %v192 = vrot.slane %v190, 4
    %v193 = vor.u32 %v192, %v188
    %v194 = vrot.slane %v193, 4
    %v196 = vshll.u32 %v121, 16
    %v198 = vrot.slane %v196, 5
    %v199 = vsel %vm151, %v194, %v198
    %v201 = vshrl.u32 %v122, 16
    %v203 = vrot.slane %v201, 4
    %v204 = vshll.u32 %v122, 16
    %v206 = vrot.slane %v204, 5
    %v207 = vor.u32 %v203, %v206
    %v208 = vrot.slane %v207, 4
    %v210 = vshll.u32 %v123, 16
    %v212 = vrot.slane %v210, 5
    %v213 = vsel %vm151, %v208, %v212
    %v214 = vshrl.u32 %v123, 16
    %v216 = vrot.slane %v214, 4
    %v217 = vor.u32 %v216, %v212
    %v218 = vrot.slane %v217, 4
    %v220 = vshll.u32 %v124, 16
    %v222 = vrot.slane %v220, 5
    %v223 = vsel %vm151, %v218, %v222
    %v225 = vshrl.u32 %v125, 16
    %v227 = vrot.slane %v225, 4
    %v228 = vshll.u32 %v125, 16
    %v230 = vrot.slane %v228, 5
    %v231 = vor.u32 %v227, %v230
    %v232 = vrot.slane %v231, 4
    %v234 = vshll.u32 %v126, 16
    %v236 = vrot.slane %v234, 5
    %v237 = vsel %vm151, %v232, %v236
    %v238 = vshrl.u32 %v126, 16
    %v240 = vrot.slane %v238, 4
    %v241 = vor.u32 %v240, %v236
    %v242 = vrot.slane %v241, 4
    %v244 = vshll.u32 %v127, 16
    %v246 = vrot.slane %v244, 5
    %v247 = vsel %vm151, %v242, %v246
    %v249 = vshrl.u32 %v128, 16
    %v251 = vrot.slane %v249, 4
    %v252 = vshll.u32 %v128, 16
    %v254 = vrot.slane %v252, 5
    %v255 = vor.u32 %v251, %v254
    %v256 = vrot.slane %v255, 4
    %v258 = vshll.u32 %v129, 16
    %v260 = vrot.slane %v258, 5
    %v261 = vsel %vm151, %v256, %v260
    %v262 = vshrl.u32 %v129, 16
    %v264 = vrot.slane %v262, 4
    %v265 = vor.u32 %v264, %v260
    %v266 = vrot.slane %v265, 4
    %v268 = vshll.u32 %v130, 16
    %v270 = vrot.slane %v268, 5
    %v271 = vsel %vm151, %v266, %v270
    %v273 = vshrl.u32 %v131, 16
    %v275 = vrot.slane %v273, 4
    %v276 = vshll.u32 %v131, 16
    %v278 = vrot.slane %v276, 5
    %v279 = vor.u32 %v275, %v278
    %v280 = vrot.slane %v279, 4
    %v282 = vshll.u32 %v132, 16
    %v284 = vrot.slane %v282, 5
    %v285 = vsel %vm151, %v280, %v284
    %v286 = vshrl.u32 %v132, 16
    %v288 = vrot.slane %v286, 4
    %v289 = vor.u32 %v288, %v284
    %v290 = vrot.slane %v289, 4
    %v292 = vshll.u32 %v133, 16
    %v294 = vrot.slane %v292, 5
    %v295 = vsel %vm151, %v290, %v294
    %v297 = vshrl.u32 %v134, 16
    %v299 = vrot.slane %v297, 4
    %v300 = vshll.u32 %v134, 16
    %v302 = vrot.slane %v300, 5
    %v303 = vor.u32 %v299, %v302
    %v304 = vrot.slane %v303, 4
    %v306 = vshll.u32 %v135, 16
    %v308 = vrot.slane %v306, 5
    %v309 = vsel %vm151, %v304, %v308
    %v310 = vshrl.u32 %v135, 16
    %v312 = vrot.slane %v310, 4
    %v313 = vor.u32 %v312, %v308
    %v314 = vrot.slane %v313, 4
    %v316 = vshll.u32 %v136, 16
    %v318 = vrot.slane %v316, 5
    %v319 = vsel %vm151, %v314, %v318
    %v321 = vshrl.u32 %v137, 16
    %v323 = vrot.slane %v321, 4
    %v324 = vshll.u32 %v137, 16
    %v326 = vrot.slane %v324, 5
    %v327 = vor.u32 %v323, %v326
    %v328 = vrot.slane %v327, 4
    %v330 = vshll.u32 %v138, 16
    %v332 = vrot.slane %v330, 5
    %v333 = vsel %vm151, %v328, %v332
    %v334 = vshrl.u32 %v138, 16
    %v336 = vrot.slane %v334, 4
    %v337 = vor.u32 %v336, %v332
    %v338 = vrot.slane %v337, 4
    %v340 = vshll.u32 %v139, 16
    %v342 = vrot.slane %v340, 5
    %v343 = vsel %vm151, %v338, %v342
    %v344 = vunpack.c.l.b16 %v165
    %v345 = vunpack.c.l.b16 %v175
    %v346 = vunpack.c.l.b16 %v189
    %v347 = vunpack.c.l.b16 %v199
    %v348 = vunpack.c.l.b16 %v213
    %v349 = vunpack.c.l.b16 %v223
    %v350 = vunpack.c.l.b16 %v237
    %v351 = vunpack.c.l.b16 %v247
    %v352 = vunpack.c.l.b16 %v261
    %v353 = vunpack.c.l.b16 %v271
    %v354 = vunpack.c.l.b16 %v285
    %v355 = vunpack.c.l.b16 %v295
    %v356 = vunpack.c.l.b16 %v309
    %v357 = vunpack.c.l.b16 %v319
    %v358 = vunpack.c.l.b16 %v333
    %v359 = vunpack.c.l.b16 %v343
    %v360 = vpack.c.b16 %v345, %v344
    %v361 = vpack.c.b16 %v347, %v346
    %v362 = vpack.c.b16 %v349, %v348
    %v363 = vpack.c.b16 %v351, %v350
    %v364 = vpack.c.b16 %v353, %v352
    %v365 = vpack.c.b16 %v355, %v354
    %v366 = vpack.c.b16 %v357, %v356
    %v367 = vpack.c.b16 %v359, %v358
    %v372 = vunpack.c.l.b16 %v145
    %v373 = vunpack.c.l.b16 %v146
    %v374 = vunpack.c.l.b16 %v147
    %v375 = vunpack.c.l.b16 %v148
    %v376 = vpack.c.b16 %v373, %v372
    %v377 = vpack.c.b16 %v375, %v374
    %vm380 = vcmask 261120
    %v382 = vsel %vm380, %v360, 0
    %v385 = vsel %vm380, %v361, 0
    %v388 = vsel %vm380, %v362, 0
    %v391 = vsel %vm380, %v363, 0
    %v394 = vsel %vm380, %v364, 0
    %v397 = vsel %vm380, %v365, 0
    %v400 = vsel %vm380, %v366, 0
    %v403 = vsel %vm380, %v367, 0
    %405 = vmatprep.subr.bf16.mxu0 0
    %406 = vmatpush1.bf16.msra.mxu0 %v376
    %407 = vmatprep.subr.bf16.mxu0 0
    %408 = vmatpush1.bf16.msra.mxu0 %v377
    %409 = vmatprep.subr.bf16.mxu0 0
    %410 = vmatpush1.bf16.msra.mxu0 0
    %411 = vmatprep.subr.bf16.mxu0 0
    %412 = vmatpush1.bf16.msra.mxu0 0
    %413 = vmatprep.subr.bf16.mxu0 0
    %414 = vmatpush1.bf16.msra.mxu0 0
    %415 = vmatprep.subr.bf16.mxu0 0
    %416 = vmatpush1.bf16.msra.mxu0 0
    %417 = vmatprep.subr.bf16.mxu0 0
    %418 = vmatpush1.bf16.msra.mxu0 0
    %419 = vmatprep.subr.bf16.mxu0 0
    %420 = vmatpush1.bf16.msra.mxu0 0
    %421 = vmatprep.subr.bf16.mxu0 0
    %422 = vmatpush1.bf16.msra.mxu0 0
    %423 = vmatprep.subr.bf16.mxu0 0
    %424 = vmatpush1.bf16.msra.mxu0 0
    %425 = vmatprep.subr.bf16.mxu0 0
    %426 = vmatpush1.bf16.msra.mxu0 0
    %427 = vmatprep.subr.bf16.mxu0 0
    %428 = vmatpush1.bf16.msra.mxu0 0
    %429 = vmatprep.subr.bf16.mxu0 0
    %430 = vmatpush1.bf16.msra.mxu0 0
    %431 = vmatprep.subr.bf16.mxu0 0
    %432 = vmatpush1.bf16.msra.mxu0 0
    %433 = vmatprep.subr.bf16.mxu0 0
    %434 = vmatpush1.bf16.msra.mxu0 0
    %435 = vmatprep.subr.bf16.mxu0 0
    %436 = vmatpush1.bf16.msra.mxu0 0
    %437 = vmatprep.mubr.bf16.mxu0 0
    %438 = vmatmul.mubr.bf16.gmra.mrb[0].mxu0 %v382
    %v439 = vpop.f32.mrb[0].mxu0
    %v440 = vadd.f32 0.0, %v439
    %v441 = vpop.f32.mrb[0].mxu0
    %v442 = vpop.f32.mrb[0].mxu0
    %v443 = vadd.f32 0.0, %v442
    %v444 = vpop.f32.mrb[0].mxu0
    %445 = vmatprep.mubr.bf16.mxu0 0
    %446 = vmatmul.mubr.bf16.gmra.mrb[0].mxu0 %v385
    %v447 = vpop.f32.mrb[0].mxu0
    %v448 = vadd.f32 0.0, %v447
    %v449 = vpop.f32.mrb[0].mxu0
    %v450 = vpop.f32.mrb[0].mxu0
    %v451 = vadd.f32 0.0, %v450
    %v452 = vpop.f32.mrb[0].mxu0
    %453 = vmatprep.mubr.bf16.mxu0 0
    %454 = vmatmul.mubr.bf16.gmra.mrb[0].mxu0 %v388
    %v455 = vpop.f32.mrb[0].mxu0
    %v456 = vadd.f32 0.0, %v455
    %v457 = vpop.f32.mrb[0].mxu0
    %v458 = vpop.f32.mrb[0].mxu0
    %v459 = vadd.f32 0.0, %v458
    %v460 = vpop.f32.mrb[0].mxu0
    %461 = vmatprep.mubr.bf16.mxu0 0
    %462 = vmatmul.mubr.bf16.gmra.mrb[0].mxu0 %v391
    %v463 = vpop.f32.mrb[0].mxu0
    %v464 = vadd.f32 0.0, %v463
    %v465 = vpop.f32.mrb[0].mxu0
    %v466 = vpop.f32.mrb[0].mxu0
    %v467 = vadd.f32 0.0, %v466
    %v468 = vpop.f32.mrb[0].mxu0
    %469 = vmatprep.mubr.bf16.mxu0 0
    %470 = vmatmul.mubr.bf16.gmra.mrb[0].mxu0 %v394
    %v471 = vpop.f32.mrb[0].mxu0
    %v472 = vadd.f32 0.0, %v471
    %v473 = vpop.f32.mrb[0].mxu0
    %v474 = vpop.f32.mrb[0].mxu0
    %v475 = vadd.f32 0.0, %v474
    %v476 = vpop.f32.mrb[0].mxu0
    %477 = vmatprep.mubr.bf16.mxu0 0
    %478 = vmatmul.mubr.bf16.gmra.mrb[0].mxu0 %v397
    %v479 = vpop.f32.mrb[0].mxu0
    %v480 = vadd.f32 0.0, %v479
    %v481 = vpop.f32.mrb[0].mxu0
    %v482 = vpop.f32.mrb[0].mxu0
    %v483 = vadd.f32 0.0, %v482
    %v484 = vpop.f32.mrb[0].mxu0
    %485 = vmatprep.mubr.bf16.mxu0 0
    %486 = vmatmul.mubr.bf16.gmra.mrb[0].mxu0 %v400
    %v487 = vpop.f32.mrb[0].mxu0
    %v488 = vadd.f32 0.0, %v487
    %v489 = vpop.f32.mrb[0].mxu0
    %v490 = vpop.f32.mrb[0].mxu0
    %v491 = vadd.f32 0.0, %v490
    %v492 = vpop.f32.mrb[0].mxu0
    %493 = vmatprep.mubr.bf16.mxu0 0
    %494 = vmatmul.mubr.bf16.gmra.mrb[0].mxu0 %v403
    %v495 = vpop.f32.mrb[0].mxu0
    %v496 = vadd.f32 0.0, %v495
    %v497 = vpop.f32.mrb[0].mxu0
    %v498 = vpop.f32.mrb[0].mxu0
    %v499 = vadd.f32 0.0, %v498
    %v500 = vpop.f32.mrb[0].mxu0
    %501 = vdwg.mxu0
    %v518 = vunpack.c.l.b16 %v116
    %v519 = vunpack.c.l.b16 %v117
    %v520 = vunpack.c.l.b16 %v119
    %v521 = vunpack.c.l.b16 %v120
    %v522 = vunpack.c.l.b16 %v122
    %v523 = vunpack.c.l.b16 %v123
    %v524 = vunpack.c.l.b16 %v125
    %v525 = vunpack.c.l.b16 %v126
    %v526 = vunpack.c.l.b16 %v128
    %v527 = vunpack.c.l.b16 %v129
    %v528 = vunpack.c.l.b16 %v131
    %v529 = vunpack.c.l.b16 %v132
    %v530 = vunpack.c.l.b16 %v134
    %v531 = vunpack.c.l.b16 %v135
    %v532 = vunpack.c.l.b16 %v137
    %v533 = vunpack.c.l.b16 %v138
    %v534 = vpack.c.b16 %v519, %v518
    %v535 = vpack.c.b16 %v521, %v520
    %v536 = vpack.c.b16 %v523, %v522
    %v537 = vpack.c.b16 %v525, %v524
    %v538 = vpack.c.b16 %v527, %v526
    %v539 = vpack.c.b16 %v529, %v528
    %v540 = vpack.c.b16 %v531, %v530
    %v541 = vpack.c.b16 %v533, %v532
    %v546 = vunpack.c.l.b16 %v140
    %v547 = vunpack.c.l.b16 %v141
    %v548 = vunpack.c.l.b16 %v142
    %v549 = vunpack.c.l.b16 %v143
    %v550 = vpack.c.b16 %v547, %v546
    %v551 = vpack.c.b16 %v549, %v548
    %v555 = vsel %vm380, %v534, 0
    %v558 = vsel %vm380, %v535, 0
    %v561 = vsel %vm380, %v536, 0
    %v564 = vsel %vm380, %v537, 0
    %v567 = vsel %vm380, %v538, 0
    %v570 = vsel %vm380, %v539, 0
    %v573 = vsel %vm380, %v540, 0
    %v576 = vsel %vm380, %v541, 0
    %578 = vmatprep.subr.bf16.mxu0 0
    %579 = vmatpush1.bf16.msra.mxu0 %v550
    %580 = vmatprep.subr.bf16.mxu0 0
    %581 = vmatpush1.bf16.msra.mxu0 %v551
    %582 = vmatprep.subr.bf16.mxu0 0
    %583 = vmatpush1.bf16.msra.mxu0 0
    %584 = vmatprep.subr.bf16.mxu0 0
    %585 = vmatpush1.bf16.msra.mxu0 0
    %586 = vmatprep.subr.bf16.mxu0 0
    %587 = vmatpush1.bf16.msra.mxu0 0
    %588 = vmatprep.subr.bf16.mxu0 0
    %589 = vmatpush1.bf16.msra.mxu0 0
    %590 = vmatprep.subr.bf16.mxu0 0
    %591 = vmatpush1.bf16.msra.mxu0 0
    %592 = vmatprep.subr.bf16.mxu0 0
    %593 = vmatpush1.bf16.msra.mxu0 0
    %594 = vmatprep.subr.bf16.mxu0 0
    %595 = vmatpush1.bf16.msra.mxu0 0
    %596 = vmatprep.subr.bf16.mxu0 0
    %597 = vmatpush1.bf16.msra.mxu0 0
    %598 = vmatprep.subr.bf16.mxu0 0
    %599 = vmatpush1.bf16.msra.mxu0 0
    %600 = vmatprep.subr.bf16.mxu0 0
    %601 = vmatpush1.bf16.msra.mxu0 0
    %602 = vmatprep.subr.bf16.mxu0 0
    %603 = vmatpush1.bf16.msra.mxu0 0
    %604 = vmatprep.subr.bf16.mxu0 0
    %605 = vmatpush1.bf16.msra.mxu0 0
    %606 = vmatprep.subr.bf16.mxu0 0
    %607 = vmatpush1.bf16.msra.mxu0 0
    %608 = vmatprep.subr.bf16.mxu0 0
    %609 = vmatpush1.bf16.msra.mxu0 0
    %610 = vmatprep.mubr.bf16.mxu0 0
    %611 = vmatmul.mubr.bf16.gmra.mrb[0].mxu0 %v555
    %v612 = vpop.f32.mrb[0].mxu0
    %v613 = vadd.f32 %v440, %v612
    %v614 = vpop.f32.mrb[0].mxu0
    %v615 = vpop.f32.mrb[0].mxu0
    %v616 = vadd.f32 %v443, %v615
    %v617 = vpop.f32.mrb[0].mxu0
    %618 = vmatprep.mubr.bf16.mxu0 0
    %619 = vmatmul.mubr.bf16.gmra.mrb[0].mxu0 %v558
    %v620 = vpop.f32.mrb[0].mxu0
    %v621 = vadd.f32 %v448, %v620
    %v622 = vpop.f32.mrb[0].mxu0
    %v623 = vpop.f32.mrb[0].mxu0
    %v624 = vadd.f32 %v451, %v623
    %v625 = vpop.f32.mrb[0].mxu0
    %626 = vmatprep.mubr.bf16.mxu0 0
    %627 = vmatmul.mubr.bf16.gmra.mrb[0].mxu0 %v561
    %v628 = vpop.f32.mrb[0].mxu0
    %v629 = vadd.f32 %v456, %v628
    %v630 = vpop.f32.mrb[0].mxu0
    %v631 = vpop.f32.mrb[0].mxu0
    %v632 = vadd.f32 %v459, %v631
    %v633 = vpop.f32.mrb[0].mxu0
    %634 = vmatprep.mubr.bf16.mxu0 0
    %635 = vmatmul.mubr.bf16.gmra.mrb[0].mxu0 %v564
    %v636 = vpop.f32.mrb[0].mxu0
    %v637 = vadd.f32 %v464, %v636
    %v638 = vpop.f32.mrb[0].mxu0
    %v639 = vpop.f32.mrb[0].mxu0
    %v640 = vadd.f32 %v467, %v639
    %v641 = vpop.f32.mrb[0].mxu0
    %642 = vmatprep.mubr.bf16.mxu0 0
    %643 = vmatmul.mubr.bf16.gmra.mrb[0].mxu0 %v567
    %v644 = vpop.f32.mrb[0].mxu0
    %v645 = vadd.f32 %v472, %v644
    %v646 = vpop.f32.mrb[0].mxu0
    %v647 = vpop.f32.mrb[0].mxu0
    %v648 = vadd.f32 %v475, %v647
    %v649 = vpop.f32.mrb[0].mxu0
    %650 = vmatprep.mubr.bf16.mxu0 0
    %651 = vmatmul.mubr.bf16.gmra.mrb[0].mxu0 %v570
    %v652 = vpop.f32.mrb[0].mxu0
    %v653 = vadd.f32 %v480, %v652
    %v654 = vpop.f32.mrb[0].mxu0
    %v655 = vpop.f32.mrb[0].mxu0
    %v656 = vadd.f32 %v483, %v655
    %v657 = vpop.f32.mrb[0].mxu0
    %658 = vmatprep.mubr.bf16.mxu0 0
    %659 = vmatmul.mubr.bf16.gmra.mrb[0].mxu0 %v573
    %v660 = vpop.f32.mrb[0].mxu0
    %v661 = vadd.f32 %v488, %v660
    %v662 = vpop.f32.mrb[0].mxu0
    %v663 = vpop.f32.mrb[0].mxu0
    %v664 = vadd.f32 %v491, %v663
    %v665 = vpop.f32.mrb[0].mxu0
    %666 = vmatprep.mubr.bf16.mxu0 0
    %667 = vmatmul.mubr.bf16.gmra.mrb[0].mxu0 %v576
    %v668 = vpop.f32.mrb[0].mxu0
    %v669 = vadd.f32 %v496, %v668
    %v670 = vpop.f32.mrb[0].mxu0
    %v671 = vpop.f32.mrb[0].mxu0
    %v672 = vadd.f32 %v499, %v671
    %v673 = vpop.f32.mrb[0].mxu0
    %674 = vdwg.mxu0
    %s675 = scalar_lea.vmem [#allocation6], 32
    %v676 = vld [vmem:[%s675] sm:$0xf]
    %v677 = vld [vmem:[%s675 + $0x4] sm:$0xf]
    %v678 = vld [vmem:[%s675 + $0x8] sm:$0xf]
    %v679 = vld [vmem:[%s675 + $0xc] sm:$0xf]
    %vm688 = vcmask 1042432
    %vm689 = vcmask 1046532
    %vm690 = vmor %vm688, %vm689
    %v691 = vrot.slane %v116, 5
    %v692 = vrot.slane %v691, 4
    %v693 = vrot.slane %v117, 5
    %v694 = vsel %vm690, %v692, %v693
    %v695 = vrot.slane %v693, 4
    %v696 = vrot.slane %v118, 5
    %v697 = vsel %vm690, %v695, %v696
    %v698 = vrot.slane %v119, 5
    %v699 = vrot.slane %v698, 4
    %v700 = vrot.slane %v120, 5
    %v701 = vsel %vm690, %v699, %v700
    %v702 = vrot.slane %v700, 4
    %v703 = vrot.slane %v121, 5
    %v704 = vsel %vm690, %v702, %v703
    %v705 = vrot.slane %v122, 5
    %v706 = vrot.slane %v705, 4
    %v707 = vrot.slane %v123, 5
    %v708 = vsel %vm690, %v706, %v707
    %v709 = vrot.slane %v707, 4
    %v710 = vrot.slane %v124, 5
    %v711 = vsel %vm690, %v709, %v710
    %v712 = vrot.slane %v125, 5
    %v713 = vrot.slane %v712, 4
    %v714 = vrot.slane %v126, 5
    %v715 = vsel %vm690, %v713, %v714
    %v716 = vrot.slane %v714, 4
    %v717 = vrot.slane %v127, 5
    %v718 = vsel %vm690, %v716, %v717
    %v719 = vrot.slane %v128, 5
    %v720 = vrot.slane %v719, 4
    %v721 = vrot.slane %v129, 5
    %v722 = vsel %vm690, %v720, %v721
    %v723 = vrot.slane %v721, 4
    %v724 = vrot.slane %v130, 5
    %v725 = vsel %vm690, %v723, %v724
    %v726 = vrot.slane %v131, 5
    %v727 = vrot.slane %v726, 4
    %v728 = vrot.slane %v132, 5
    %v729 = vsel %vm690, %v727, %v728
    %v730 = vrot.slane %v728, 4
    %v731 = vrot.slane %v133, 5
    %v732 = vsel %vm690, %v730, %v731
    %v733 = vrot.slane %v134, 5
    %v734 = vrot.slane %v733, 4
    %v735 = vrot.slane %v135, 5
    %v736 = vsel %vm690, %v734, %v735
    %v737 = vrot.slane %v735, 4
    %v738 = vrot.slane %v136, 5
    %v739 = vsel %vm690, %v737, %v738
    %v740 = vrot.slane %v137, 5
    %v741 = vrot.slane %v740, 4
    %v742 = vrot.slane %v138, 5
    %v743 = vsel %vm690, %v741, %v742
    %v744 = vrot.slane %v742, 4
    %v745 = vrot.slane %v139, 5
    %v746 = vsel %vm690, %v744, %v745
    %v747 = vunpack.c.l.b16 %v694
    %v748 = vunpack.c.l.b16 %v697
    %v749 = vunpack.c.l.b16 %v701
    %v750 = vunpack.c.l.b16 %v704
    %v751 = vunpack.c.l.b16 %v708
    %v752 = vunpack.c.l.b16 %v711
    %v753 = vunpack.c.l.b16 %v715
    %v754 = vunpack.c.l.b16 %v718
    %v755 = vunpack.c.l.b16 %v722
    %v756 = vunpack.c.l.b16 %v725
    %v757 = vunpack.c.l.b16 %v729
    %v758 = vunpack.c.l.b16 %v732
    %v759 = vunpack.c.l.b16 %v736
    %v760 = vunpack.c.l.b16 %v739
    %v761 = vunpack.c.l.b16 %v743
    %v762 = vunpack.c.l.b16 %v746
    %v763 = vpack.c.b16 %v748, %v747
    %v764 = vpack.c.b16 %v750, %v749
    %v765 = vpack.c.b16 %v752, %v751
    %v766 = vpack.c.b16 %v754, %v753
    %v767 = vpack.c.b16 %v756, %v755
    %v768 = vpack.c.b16 %v758, %v757
    %v769 = vpack.c.b16 %v760, %v759
    %v770 = vpack.c.b16 %v762, %v761
    %v775 = vunpack.c.l.b16 %v676
    %v776 = vunpack.c.l.b16 %v677
    %v777 = vunpack.c.l.b16 %v678
    %v778 = vunpack.c.l.b16 %v679
    %v779 = vpack.c.b16 %v776, %v775
    %v780 = vpack.c.b16 %v778, %v777
    %v784 = vsel %vm380, %v763, 0
    %v787 = vsel %vm380, %v764, 0
    %v790 = vsel %vm380, %v765, 0
    %v793 = vsel %vm380, %v766, 0
    %v796 = vsel %vm380, %v767, 0
    %v799 = vsel %vm380, %v768, 0
    %v802 = vsel %vm380, %v769, 0
    %v805 = vsel %vm380, %v770, 0
    %807 = vmatprep.subr.bf16.mxu0 0
    %808 = vmatpush1.bf16.msra.mxu0 %v779
    %809 = vmatprep.subr.bf16.mxu0 0
    %810 = vmatpush1.bf16.msra.mxu0 %v780
    %811 = vmatprep.subr.bf16.mxu0 0
    %812 = vmatpush1.bf16.msra.mxu0 0
    %813 = vmatprep.subr.bf16.mxu0 0
    %814 = vmatpush1.bf16.msra.mxu0 0
    %815 = vmatprep.subr.bf16.mxu0 0
    %816 = vmatpush1.bf16.msra.mxu0 0
    %817 = vmatprep.subr.bf16.mxu0 0
    %818 = vmatpush1.bf16.msra.mxu0 0
    %819 = vmatprep.subr.bf16.mxu0 0
    %820 = vmatpush1.bf16.msra.mxu0 0
    %821 = vmatprep.subr.bf16.mxu0 0
    %822 = vmatpush1.bf16.msra.mxu0 0
    %823 = vmatprep.subr.bf16.mxu0 0
    %824 = vmatpush1.bf16.msra.mxu0 0
    %825 = vmatprep.subr.bf16.mxu0 0
    %826 = vmatpush1.bf16.msra.mxu0 0
    %827 = vmatprep.subr.bf16.mxu0 0
    %828 = vmatpush1.bf16.msra.mxu0 0
    %829 = vmatprep.subr.bf16.mxu0 0
    %830 = vmatpush1.bf16.msra.mxu0 0
    %831 = vmatprep.subr.bf16.mxu0 0
    %832 = vmatpush1.bf16.msra.mxu0 0
    %833 = vmatprep.subr.bf16.mxu0 0
    %834 = vmatpush1.bf16.msra.mxu0 0
    %835 = vmatprep.subr.bf16.mxu0 0
    %836 = vmatpush1.bf16.msra.mxu0 0
    %837 = vmatprep.subr.bf16.mxu0 0
    %838 = vmatpush1.bf16.msra.mxu0 0
    %839 = vmatprep.mubr.bf16.mxu0 0
    %840 = vmatmul.mubr.bf16.gmra.mrb[0].mxu0 %v784
    %v841 = vpop.f32.mrb[0].mxu0
    %v842 = vadd.f32 0.0, %v841
    %v843 = vpop.f32.mrb[0].mxu0
    %v844 = vpop.f32.mrb[0].mxu0
    %v845 = vadd.f32 0.0, %v844
    %v846 = vpop.f32.mrb[0].mxu0
    %847 = vmatprep.mubr.bf16.mxu0 0
    %848 = vmatmul.mubr.bf16.gmra.mrb[0].mxu0 %v787
    %v849 = vpop.f32.mrb[0].mxu0
    %v850 = vadd.f32 0.0, %v849
    %v851 = vpop.f32.mrb[0].mxu0
    %v852 = vpop.f32.mrb[0].mxu0
    %v853 = vadd.f32 0.0, %v852
    %v854 = vpop.f32.mrb[0].mxu0
    %855 = vmatprep.mubr.bf16.mxu0 0
    %856 = vmatmul.mubr.bf16.gmra.mrb[0].mxu0 %v790
    %v857 = vpop.f32.mrb[0].mxu0
    %v858 = vadd.f32 0.0, %v857
    %v859 = vpop.f32.mrb[0].mxu0
    %v860 = vpop.f32.mrb[0].mxu0
    %v861 = vadd.f32 0.0, %v860
    %v862 = vpop.f32.mrb[0].mxu0
    %863 = vmatprep.mubr.bf16.mxu0 0
    %864 = vmatmul.mubr.bf16.gmra.mrb[0].mxu0 %v793
    %v865 = vpop.f32.mrb[0].mxu0
    %v866 = vadd.f32 0.0, %v865
    %v867 = vpop.f32.mrb[0].mxu0
    %v868 = vpop.f32.mrb[0].mxu0
    %v869 = vadd.f32 0.0, %v868
    %v870 = vpop.f32.mrb[0].mxu0
    %871 = vmatprep.mubr.bf16.mxu0 0
    %872 = vmatmul.mubr.bf16.gmra.mrb[0].mxu0 %v796
    %v873 = vpop.f32.mrb[0].mxu0
    %v874 = vadd.f32 0.0, %v873
    %v875 = vpop.f32.mrb[0].mxu0
    %v876 = vpop.f32.mrb[0].mxu0
    %v877 = vadd.f32 0.0, %v876
    %v878 = vpop.f32.mrb[0].mxu0
    %879 = vmatprep.mubr.bf16.mxu0 0
    %880 = vmatmul.mubr.bf16.gmra.mrb[0].mxu0 %v799
    %v881 = vpop.f32.mrb[0].mxu0
    %v882 = vadd.f32 0.0, %v881
    %v883 = vpop.f32.mrb[0].mxu0
    %v884 = vpop.f32.mrb[0].mxu0
    %v885 = vadd.f32 0.0, %v884
    %v886 = vpop.f32.mrb[0].mxu0
    %887 = vmatprep.mubr.bf16.mxu0 0
    %888 = vmatmul.mubr.bf16.gmra.mrb[0].mxu0 %v802
    %v889 = vpop.f32.mrb[0].mxu0
    %v890 = vadd.f32 0.0, %v889
    %v891 = vpop.f32.mrb[0].mxu0
    %v892 = vpop.f32.mrb[0].mxu0
    %v893 = vadd.f32 0.0, %v892
    %v894 = vpop.f32.mrb[0].mxu0
    %895 = vmatprep.mubr.bf16.mxu0 0
    %896 = vmatmul.mubr.bf16.gmra.mrb[0].mxu0 %v805
    %v897 = vpop.f32.mrb[0].mxu0
    %v898 = vadd.f32 0.0, %v897
    %v899 = vpop.f32.mrb[0].mxu0
    %v900 = vpop.f32.mrb[0].mxu0
    %v901 = vadd.f32 0.0, %v900
    %v902 = vpop.f32.mrb[0].mxu0
    %903 = vdwg.mxu0
    %v904 = vadd.f32 %v613, %v842
    %v905 = vadd.f32 %v616, %v845
    %v906 = vadd.f32 %v621, %v850
    %v907 = vadd.f32 %v624, %v853
    %v908 = vadd.f32 %v629, %v858
    %v909 = vadd.f32 %v632, %v861
    %v910 = vadd.f32 %v637, %v866
    %v911 = vadd.f32 %v640, %v869
    %v912 = vadd.f32 %v645, %v874
    %v913 = vadd.f32 %v648, %v877
    %v914 = vadd.f32 %v653, %v882
    %v915 = vadd.f32 %v656, %v885
    %v916 = vadd.f32 %v661, %v890
    %v917 = vadd.f32 %v664, %v893
    %v918 = vadd.f32 %v669, %v898
    %v919 = vadd.f32 %v672, %v901
    %s920 = scalar_lea.vmem [#allocation6], 48
    %v921 = vld [vmem:[%s920] sm:$0xf]
    %v922 = vld [vmem:[%s920 + $0x4] sm:$0xf]
    %v923 = vld [vmem:[%s920 + $0x8] sm:$0xf]
    %v924 = vld [vmem:[%s920 + $0xc] sm:$0xf]
    %vm925 = vsmask.f32 2304
    %vm926 = vsmask.f32 6416
    %vm927 = vmor %vm925, %vm926
    %v928 = vrot.slane %v153, 5
    %v929 = vrot.slane %v156, 6
    %v930 = vor.u32 %v928, %v929
    %v931 = vrot.slane %v930, 4
    %v932 = vrot.slane %v166, 5
    %v933 = vrot.slane %v162, 6
    %v934 = vor.u32 %v932, %v933
    %v935 = vsel %vm927, %v931, %v934
    %v936 = vrot.slane %v934, 4
    %v937 = vshrl.u32 %v118, 16
    %v939 = vrot.slane %v937, 5
    %v940 = vrot.slane %v172, 6
    %v941 = vor.u32 %v939, %v940
    %v942 = vsel %vm927, %v936, %v941
    %v943 = vrot.slane %v177, 5
    %v944 = vrot.slane %v180, 6
    %v945 = vor.u32 %v943, %v944
    %v946 = vrot.slane %v945, 4
    %v947 = vrot.slane %v190, 5
    %v948 = vrot.slane %v186, 6
    %v949 = vor.u32 %v947, %v948
    %v950 = vsel %vm927, %v946, %v949
    %v951 = vrot.slane %v949, 4
    %v952 = vshrl.u32 %v121, 16
    %v954 = vrot.slane %v952, 5
    %v955 = vrot.slane %v196, 6
    %v956 = vor.u32 %v954, %v955
    %v957 = vsel %vm927, %v951, %v956
    %v958 = vrot.slane %v201, 5
    %v959 = vrot.slane %v204, 6
    %v960 = vor.u32 %v958, %v959
    %v961 = vrot.slane %v960, 4
    %v962 = vrot.slane %v214, 5
    %v963 = vrot.slane %v210, 6
    %v964 = vor.u32 %v962, %v963
    %v965 = vsel %vm927, %v961, %v964
    %v966 = vrot.slane %v964, 4
    %v967 = vshrl.u32 %v124, 16
    %v969 = vrot.slane %v967, 5
    %v970 = vrot.slane %v220, 6
    %v971 = vor.u32 %v969, %v970
    %v972 = vsel %vm927, %v966, %v971
    %v973 = vrot.slane %v225, 5
    %v974 = vrot.slane %v228, 6
    %v975 = vor.u32 %v973, %v974
    %v976 = vrot.slane %v975, 4
    %v977 = vrot.slane %v238, 5
    %v978 = vrot.slane %v234, 6
    %v979 = vor.u32 %v977, %v978
    %v980 = vsel %vm927, %v976, %v979
    %v981 = vrot.slane %v979, 4
    %v982 = vshrl.u32 %v127, 16
    %v984 = vrot.slane %v982, 5
    %v985 = vrot.slane %v244, 6
    %v986 = vor.u32 %v984, %v985
    %v987 = vsel %vm927, %v981, %v986
    %v988 = vrot.slane %v249, 5
    %v989 = vrot.slane %v252, 6
    %v990 = vor.u32 %v988, %v989
    %v991 = vrot.slane %v990, 4
    %v992 = vrot.slane %v262, 5
    %v993 = vrot.slane %v258, 6
    %v994 = vor.u32 %v992, %v993
    %v995 = vsel %vm927, %v991, %v994
    %v996 = vrot.slane %v994, 4
    %v997 = vshrl.u32 %v130, 16
    %v999 = vrot.slane %v997, 5
    %v1000 = vrot.slane %v268, 6
    %v1001 = vor.u32 %v999, %v1000
    %v1002 = vsel %vm927, %v996, %v1001
    %v1003 = vrot.slane %v273, 5
    %v1004 = vrot.slane %v276, 6
    %v1005 = vor.u32 %v1003, %v1004
    %v1006 = vrot.slane %v1005, 4
    %v1007 = vrot.slane %v286, 5
    %v1008 = vrot.slane %v282, 6
    %v1009 = vor.u32 %v1007, %v1008
    %v1010 = vsel %vm927, %v1006, %v1009
    %v1011 = vrot.slane %v1009, 4
    %v1012 = vshrl.u32 %v133, 16
    %v1014 = vrot.slane %v1012, 5
    %v1015 = vrot.slane %v292, 6
    %v1016 = vor.u32 %v1014, %v1015
    %v1017 = vsel %vm927, %v1011, %v1016
    %v1018 = vrot.slane %v297, 5
    %v1019 = vrot.slane %v300, 6
    %v1020 = vor.u32 %v1018, %v1019
    %v1021 = vrot.slane %v1020, 4
    %v1022 = vrot.slane %v310, 5
    %v1023 = vrot.slane %v306, 6
    %v1024 = vor.u32 %v1022, %v1023
    %v1025 = vsel %vm927, %v1021, %v1024
    %v1026 = vrot.slane %v1024, 4
    %v1027 = vshrl.u32 %v136, 16
    %v1029 = vrot.slane %v1027, 5
    %v1030 = vrot.slane %v316, 6
    %v1031 = vor.u32 %v1029, %v1030
    %v1032 = vsel %vm927, %v1026, %v1031
    %v1033 = vrot.slane %v321, 5
    %v1034 = vrot.slane %v324, 6
    %v1035 = vor.u32 %v1033, %v1034
    %v1036 = vrot.slane %v1035, 4
    %v1037 = vrot.slane %v334, 5
    %v1038 = vrot.slane %v330, 6
    %v1039 = vor.u32 %v1037, %v1038
    %v1040 = vsel %vm927, %v1036, %v1039
    %v1041 = vrot.slane %v1039, 4
    %v1042 = vshrl.u32 %v139, 16
    %v1044 = vrot.slane %v1042, 5
    %v1045 = vrot.slane %v340, 6
    %v1046 = vor.u32 %v1044, %v1045
    %v1047 = vsel %vm927, %v1041, %v1046
    %v1048 = vunpack.c.l.b16 %v935
    %v1049 = vunpack.c.l.b16 %v942
    %v1050 = vunpack.c.l.b16 %v950
    %v1051 = vunpack.c.l.b16 %v957
    %v1052 = vunpack.c.l.b16 %v965
    %v1053 = vunpack.c.l.b16 %v972
    %v1054 = vunpack.c.l.b16 %v980
    %v1055 = vunpack.c.l.b16 %v987
    %v1056 = vunpack.c.l.b16 %v995
    %v1057 = vunpack.c.l.b16 %v1002
    %v1058 = vunpack.c.l.b16 %v1010
    %v1059 = vunpack.c.l.b16 %v1017
    %v1060 = vunpack.c.l.b16 %v1025
    %v1061 = vunpack.c.l.b16 %v1032
    %v1062 = vunpack.c.l.b16 %v1040
    %v1063 = vunpack.c.l.b16 %v1047
    %v1064 = vpack.c.b16 %v1049, %v1048
    %v1065 = vpack.c.b16 %v1051, %v1050
    %v1066 = vpack.c.b16 %v1053, %v1052
    %v1067 = vpack.c.b16 %v1055, %v1054
    %v1068 = vpack.c.b16 %v1057, %v1056
    %v1069 = vpack.c.b16 %v1059, %v1058
    %v1070 = vpack.c.b16 %v1061, %v1060
    %v1071 = vpack.c.b16 %v1063, %v1062
    %v1076 = vunpack.c.l.b16 %v921
    %v1077 = vunpack.c.l.b16 %v922
    %v1078 = vunpack.c.l.b16 %v923
    %v1079 = vunpack.c.l.b16 %v924
    %v1080 = vpack.c.b16 %v1077, %v1076
    %v1081 = vpack.c.b16 %v1079, %v1078
    %v1085 = vsel %vm380, %v1064, 0
    %v1088 = vsel %vm380, %v1065, 0
    %v1091 = vsel %vm380, %v1066, 0
    %v1094 = vsel %vm380, %v1067, 0
    %v1097 = vsel %vm380, %v1068, 0
    %v1100 = vsel %vm380, %v1069, 0
    %v1103 = vsel %vm380, %v1070, 0
    %v1106 = vsel %vm380, %v1071, 0
    %1108 = vmatprep.subr.bf16.mxu0 0
    %1109 = vmatpush1.bf16.msra.mxu0 %v1080
    %1110 = vmatprep.subr.bf16.mxu0 0
    %1111 = vmatpush1.bf16.msra.mxu0 %v1081
    %1112 = vmatprep.subr.bf16.mxu0 0
    %1113 = vmatpush1.bf16.msra.mxu0 0
    %1114 = vmatprep.subr.bf16.mxu0 0
    %1115 = vmatpush1.bf16.msra.mxu0 0
    %1116 = vmatprep.subr.bf16.mxu0 0
    %1117 = vmatpush1.bf16.msra.mxu0 0
    %1118 = vmatprep.subr.bf16.mxu0 0
    %1119 = vmatpush1.bf16.msra.mxu0 0
    %1120 = vmatprep.subr.bf16.mxu0 0
    %1121 = vmatpush1.bf16.msra.mxu0 0
    %1122 = vmatprep.subr.bf16.mxu0 0
    %1123 = vmatpush1.bf16.msra.mxu0 0
    %1124 = vmatprep.subr.bf16.mxu0 0
    %1125 = vmatpush1.bf16.msra.mxu0 0
    %1126 = vmatprep.subr.bf16.mxu0 0
    %1127 = vmatpush1.bf16.msra.mxu0 0
    %1128 = vmatprep.subr.bf16.mxu0 0
    %1129 = vmatpush1.bf16.msra.mxu0 0
    %1130 = vmatprep.subr.bf16.mxu0 0
    %1131 = vmatpush1.bf16.msra.mxu0 0
    %1132 = vmatprep.subr.bf16.mxu0 0
    %1133 = vmatpush1.bf16.msra.mxu0 0
    %1134 = vmatprep.subr.bf16.mxu0 0
    %1135 = vmatpush1.bf16.msra.mxu0 0
    %1136 = vmatprep.subr.bf16.mxu0 0
    %1137 = vmatpush1.bf16.msra.mxu0 0
    %1138 = vmatprep.subr.bf16.mxu0 0
    %1139 = vmatpush1.bf16.msra.mxu0 0
    %1140 = vmatprep.mubr.bf16.mxu0 0
    %1141 = vmatmul.mubr.bf16.gmra.mrb[0].mxu0 %v1085
    %v1142 = vpop.f32.mrb[0].mxu0
    %v1143 = vadd.f32 0.0, %v1142
    %v1144 = vpop.f32.mrb[0].mxu0
    %v1145 = vpop.f32.mrb[0].mxu0
    %v1146 = vadd.f32 0.0, %v1145
    %v1147 = vpop.f32.mrb[0].mxu0
    %1148 = vmatprep.mubr.bf16.mxu0 0
    %1149 = vmatmul.mubr.bf16.gmra.mrb[0].mxu0 %v1088
    %v1150 = vpop.f32.mrb[0].mxu0
    %v1151 = vadd.f32 0.0, %v1150
    %v1152 = vpop.f32.mrb[0].mxu0
    %v1153 = vpop.f32.mrb[0].mxu0
    %v1154 = vadd.f32 0.0, %v1153
    %v1155 = vpop.f32.mrb[0].mxu0
    %1156 = vmatprep.mubr.bf16.mxu0 0
    %1157 = vmatmul.mubr.bf16.gmra.mrb[0].mxu0 %v1091
    %v1158 = vpop.f32.mrb[0].mxu0
    %v1159 = vadd.f32 0.0, %v1158
    %v1160 = vpop.f32.mrb[0].mxu0
    %v1161 = vpop.f32.mrb[0].mxu0
    %v1162 = vadd.f32 0.0, %v1161
    %v1163 = vpop.f32.mrb[0].mxu0
    %1164 = vmatprep.mubr.bf16.mxu0 0
    %1165 = vmatmul.mubr.bf16.gmra.mrb[0].mxu0 %v1094
    %v1166 = vpop.f32.mrb[0].mxu0
    %v1167 = vadd.f32 0.0, %v1166
    %v1168 = vpop.f32.mrb[0].mxu0
    %v1169 = vpop.f32.mrb[0].mxu0
    %v1170 = vadd.f32 0.0, %v1169
    %v1171 = vpop.f32.mrb[0].mxu0
    %1172 = vmatprep.mubr.bf16.mxu0 0
    %1173 = vmatmul.mubr.bf16.gmra.mrb[0].mxu0 %v1097
    %v1174 = vpop.f32.mrb[0].mxu0
    %v1175 = vadd.f32 0.0, %v1174
    %v1176 = vpop.f32.mrb[0].mxu0
    %v1177 = vpop.f32.mrb[0].mxu0
    %v1178 = vadd.f32 0.0, %v1177
    %v1179 = vpop.f32.mrb[0].mxu0
    %1180 = vmatprep.mubr.bf16.mxu0 0
    %1181 = vmatmul.mubr.bf16.gmra.mrb[0].mxu0 %v1100
    %v1182 = vpop.f32.mrb[0].mxu0
    %v1183 = vadd.f32 0.0, %v1182
    %v1184 = vpop.f32.mrb[0].mxu0
    %v1185 = vpop.f32.mrb[0].mxu0
    %v1186 = vadd.f32 0.0, %v1185
    %v1187 = vpop.f32.mrb[0].mxu0
    %1188 = vmatprep.mubr.bf16.mxu0 0
    %1189 = vmatmul.mubr.bf16.gmra.mrb[0].mxu0 %v1103
    %v1190 = vpop.f32.mrb[0].mxu0
    %v1191 = vadd.f32 0.0, %v1190
    %v1192 = vpop.f32.mrb[0].mxu0
    %v1193 = vpop.f32.mrb[0].mxu0
    %v1194 = vadd.f32 0.0, %v1193
    %v1195 = vpop.f32.mrb[0].mxu0
    %1196 = vmatprep.mubr.bf16.mxu0 0
    %1197 = vmatmul.mubr.bf16.gmra.mrb[0].mxu0 %v1106
    %v1198 = vpop.f32.mrb[0].mxu0
    %v1199 = vadd.f32 0.0, %v1198
    %v1200 = vpop.f32.mrb[0].mxu0
    %v1201 = vpop.f32.mrb[0].mxu0
    %v1202 = vadd.f32 0.0, %v1201
    %v1203 = vpop.f32.mrb[0].mxu0
    %1204 = vdwg.mxu0
    %v1205 = vadd.f32 %v904, %v1143
    %v1206 = vadd.f32 %v905, %v1146
    %v1207 = vadd.f32 %v906, %v1151
    %v1208 = vadd.f32 %v907, %v1154
    %v1209 = vadd.f32 %v908, %v1159
    %v1210 = vadd.f32 %v909, %v1162
    %v1211 = vadd.f32 %v910, %v1167
    %v1212 = vadd.f32 %v911, %v1170
    %v1213 = vadd.f32 %v912, %v1175
    %v1214 = vadd.f32 %v913, %v1178
    %v1215 = vadd.f32 %v914, %v1183
    %v1216 = vadd.f32 %v915, %v1186
    %v1217 = vadd.f32 %v916, %v1191
    %v1218 = vadd.f32 %v917, %v1194
    %v1219 = vadd.f32 %v918, %v1199
    %v1220 = vadd.f32 %v919, %v1202
    %s1221 = scalar_lea.vmem [#allocation6], 64
    %v1222 = vld [vmem:[%s1221] sm:$0xf]
    %v1223 = vld [vmem:[%s1221 + $0x4] sm:$0xf]
    %v1224 = vld [vmem:[%s1221 + $0x8] sm:$0xf]
    %v1225 = vld [vmem:[%s1221 + $0xc] sm:$0xf]
    %vm1226 = vcmask 1041408
    %vm1227 = vcmask 1045508
    %vm1228 = vmor %vm1226, %vm1227
    %v1229 = vrot.slane %v116, 6
    %v1230 = vrot.slane %v1229, 4
    %v1231 = vrot.slane %v117, 6
    %v1232 = vsel %vm1228, %v1230, %v1231
    %v1233 = vrot.slane %v1231, 4
    %v1234 = vrot.slane %v118, 6
    %v1235 = vsel %vm1228, %v1233, %v1234
    %v1236 = vrot.slane %v119, 6
    %v1237 = vrot.slane %v1236, 4
    %v1238 = vrot.slane %v120, 6
    %v1239 = vsel %vm1228, %v1237, %v1238
    %v1240 = vrot.slane %v1238, 4
    %v1241 = vrot.slane %v121, 6
    %v1242 = vsel %vm1228, %v1240, %v1241
    %v1243 = vrot.slane %v122, 6
    %v1244 = vrot.slane %v1243, 4
    %v1245 = vrot.slane %v123, 6
    %v1246 = vsel %vm1228, %v1244, %v1245
    %v1247 = vrot.slane %v1245, 4
    %v1248 = vrot.slane %v124, 6
    %v1249 = vsel %vm1228, %v1247, %v1248
    %v1250 = vrot.slane %v125, 6
    %v1251 = vrot.slane %v1250, 4
    %v1252 = vrot.slane %v126, 6
    %v1253 = vsel %vm1228, %v1251, %v1252
    %v1254 = vrot.slane %v1252, 4
    %v1255 = vrot.slane %v127, 6
    %v1256 = vsel %vm1228, %v1254, %v1255
    %v1257 = vrot.slane %v128, 6
    %v1258 = vrot.slane %v1257, 4
    %v1259 = vrot.slane %v129, 6
    %v1260 = vsel %vm1228, %v1258, %v1259
    %v1261 = vrot.slane %v1259, 4
    %v1262 = vrot.slane %v130, 6
    %v1263 = vsel %vm1228, %v1261, %v1262
    %v1264 = vrot.slane %v131, 6
    %v1265 = vrot.slane %v1264, 4
    %v1266 = vrot.slane %v132, 6
    %v1267 = vsel %vm1228, %v1265, %v1266
    %v1268 = vrot.slane %v1266, 4
    %v1269 = vrot.slane %v133, 6
    %v1270 = vsel %vm1228, %v1268, %v1269
    %v1271 = vrot.slane %v134, 6
    %v1272 = vrot.slane %v1271, 4
    %v1273 = vrot.slane %v135, 6
    %v1274 = vsel %vm1228, %v1272, %v1273
    %v1275 = vrot.slane %v1273, 4
    %v1276 = vrot.slane %v136, 6
    %v1277 = vsel %vm1228, %v1275, %v1276
    %v1278 = vrot.slane %v137, 6
    %v1279 = vrot.slane %v1278, 4
    %v1280 = vrot.slane %v138, 6
    %v1281 = vsel %vm1228, %v1279, %v1280
    %v1282 = vrot.slane %v1280, 4
    %v1283 = vrot.slane %v139, 6
    %v1284 = vsel %vm1228, %v1282, %v1283
    %v1285 = vunpack.c.l.b16 %v1232
    %v1286 = vunpack.c.l.b16 %v1235
    %v1287 = vunpack.c.l.b16 %v1239
    %v1288 = vunpack.c.l.b16 %v1242
    %v1289 = vunpack.c.l.b16 %v1246
    %v1290 = vunpack.c.l.b16 %v1249
    %v1291 = vunpack.c.l.b16 %v1253
    %v1292 = vunpack.c.l.b16 %v1256
    %v1293 = vunpack.c.l.b16 %v1260
    %v1294 = vunpack.c.l.b16 %v1263
    %v1295 = vunpack.c.l.b16 %v1267
    %v1296 = vunpack.c.l.b16 %v1270
    %v1297 = vunpack.c.l.b16 %v1274
    %v1298 = vunpack.c.l.b16 %v1277
    %v1299 = vunpack.c.l.b16 %v1281
    %v1300 = vunpack.c.l.b16 %v1284
    %v1301 = vpack.c.b16 %v1286, %v1285
    %v1302 = vpack.c.b16 %v1288, %v1287
    %v1303 = vpack.c.b16 %v1290, %v1289
    %v1304 = vpack.c.b16 %v1292, %v1291
    %v1305 = vpack.c.b16 %v1294, %v1293
    %v1306 = vpack.c.b16 %v1296, %v1295
    %v1307 = vpack.c.b16 %v1298, %v1297
    %v1308 = vpack.c.b16 %v1300, %v1299
    %v1313 = vunpack.c.l.b16 %v1222
    %v1314 = vunpack.c.l.b16 %v1223
    %v1315 = vunpack.c.l.b16 %v1224
    %v1316 = vunpack.c.l.b16 %v1225
    %v1317 = vpack.c.b16 %v1314, %v1313
    %v1318 = vpack.c.b16 %v1316, %v1315
    %v1322 = vsel %vm380, %v1301, 0
    %v1325 = vsel %vm380, %v1302, 0
    %v1328 = vsel %vm380, %v1303, 0
    %v1331 = vsel %vm380, %v1304, 0
    %v1334 = vsel %vm380, %v1305, 0
    %v1337 = vsel %vm380, %v1306, 0
    %v1340 = vsel %vm380, %v1307, 0
    %v1343 = vsel %vm380, %v1308, 0
    %1345 = vmatprep.subr.bf16.mxu0 0
    %1346 = vmatpush1.bf16.msra.mxu0 %v1317
    %1347 = vmatprep.subr.bf16.mxu0 0
    %1348 = vmatpush1.bf16.msra.mxu0 %v1318
    %1349 = vmatprep.subr.bf16.mxu0 0
    %1350 = vmatpush1.bf16.msra.mxu0 0
    %1351 = vmatprep.subr.bf16.mxu0 0
    %1352 = vmatpush1.bf16.msra.mxu0 0
    %1353 = vmatprep.subr.bf16.mxu0 0
    %1354 = vmatpush1.bf16.msra.mxu0 0
    %1355 = vmatprep.subr.bf16.mxu0 0
    %1356 = vmatpush1.bf16.msra.mxu0 0
    %1357 = vmatprep.subr.bf16.mxu0 0
    %1358 = vmatpush1.bf16.msra.mxu0 0
    %1359 = vmatprep.subr.bf16.mxu0 0
    %1360 = vmatpush1.bf16.msra.mxu0 0
    %1361 = vmatprep.subr.bf16.mxu0 0
    %1362 = vmatpush1.bf16.msra.mxu0 0
    %1363 = vmatprep.subr.bf16.mxu0 0
    %1364 = vmatpush1.bf16.msra.mxu0 0
    %1365 = vmatprep.subr.bf16.mxu0 0
    %1366 = vmatpush1.bf16.msra.mxu0 0
    %1367 = vmatprep.subr.bf16.mxu0 0
    %1368 = vmatpush1.bf16.msra.mxu0 0
    %1369 = vmatprep.subr.bf16.mxu0 0
    %1370 = vmatpush1.bf16.msra.mxu0 0
    %1371 = vmatprep.subr.bf16.mxu0 0
    %1372 = vmatpush1.bf16.msra.mxu0 0
    %1373 = vmatprep.subr.bf16.mxu0 0
    %1374 = vmatpush1.bf16.msra.mxu0 0
    %1375 = vmatprep.subr.bf16.mxu0 0
    %1376 = vmatpush1.bf16.msra.mxu0 0
    %1377 = vmatprep.mubr.bf16.mxu0 0
    %1378 = vmatmul.mubr.bf16.gmra.mrb[0].mxu0 %v1322
    %v1379 = vpop.f32.mrb[0].mxu0
    %v1380 = vadd.f32 0.0, %v1379
    %v1381 = vpop.f32.mrb[0].mxu0
    %v1382 = vpop.f32.mrb[0].mxu0
    %v1383 = vadd.f32 0.0, %v1382
    %v1384 = vpop.f32.mrb[0].mxu0
    %1385 = vmatprep.mubr.bf16.mxu0 0
    %1386 = vmatmul.mubr.bf16.gmra.mrb[0].mxu0 %v1325
    %v1387 = vpop.f32.mrb[0].mxu0
    %v1388 = vadd.f32 0.0, %v1387
    %v1389 = vpop.f32.mrb[0].mxu0
    %v1390 = vpop.f32.mrb[0].mxu0
    %v1391 = vadd.f32 0.0, %v1390
    %v1392 = vpop.f32.mrb[0].mxu0
    %1393 = vmatprep.mubr.bf16.mxu0 0
    %1394 = vmatmul.mubr.bf16.gmra.mrb[0].mxu0 %v1328
    %v1395 = vpop.f32.mrb[0].mxu0
    %v1396 = vadd.f32 0.0, %v1395
    %v1397 = vpop.f32.mrb[0].mxu0
    %v1398 = vpop.f32.mrb[0].mxu0
    %v1399 = vadd.f32 0.0, %v1398
    %v1400 = vpop.f32.mrb[0].mxu0
    %1401 = vmatprep.mubr.bf16.mxu0 0
    %1402 = vmatmul.mubr.bf16.gmra.mrb[0].mxu0 %v1331
    %v1403 = vpop.f32.mrb[0].mxu0
    %v1404 = vadd.f32 0.0, %v1403
    %v1405 = vpop.f32.mrb[0].mxu0
    %v1406 = vpop.f32.mrb[0].mxu0
    %v1407 = vadd.f32 0.0, %v1406
    %v1408 = vpop.f32.mrb[0].mxu0
    %1409 = vmatprep.mubr.bf16.mxu0 0
    %1410 = vmatmul.mubr.bf16.gmra.mrb[0].mxu0 %v1334
    %v1411 = vpop.f32.mrb[0].mxu0
    %v1412 = vadd.f32 0.0, %v1411
    %v1413 = vpop.f32.mrb[0].mxu0
    %v1414 = vpop.f32.mrb[0].mxu0
    %v1415 = vadd.f32 0.0, %v1414
    %v1416 = vpop.f32.mrb[0].mxu0
    %1417 = vmatprep.mubr.bf16.mxu0 0
    %1418 = vmatmul.mubr.bf16.gmra.mrb[0].mxu0 %v1337
    %v1419 = vpop.f32.mrb[0].mxu0
    %v1420 = vadd.f32 0.0, %v1419
    %v1421 = vpop.f32.mrb[0].mxu0
    %v1422 = vpop.f32.mrb[0].mxu0
    %v1423 = vadd.f32 0.0, %v1422
    %v1424 = vpop.f32.mrb[0].mxu0
    %1425 = vmatprep.mubr.bf16.mxu0 0
    %1426 = vmatmul.mubr.bf16.gmra.mrb[0].mxu0 %v1340
    %v1427 = vpop.f32.mrb[0].mxu0
    %v1428 = vadd.f32 0.0, %v1427
    %v1429 = vpop.f32.mrb[0].mxu0
    %v1430 = vpop.f32.mrb[0].mxu0
    %v1431 = vadd.f32 0.0, %v1430
    %v1432 = vpop.f32.mrb[0].mxu0
    %1433 = vmatprep.mubr.bf16.mxu0 0
    %1434 = vmatmul.mubr.bf16.gmra.mrb[0].mxu0 %v1343
    %v1435 = vpop.f32.mrb[0].mxu0
    %v1436 = vadd.f32 0.0, %v1435
    %v1437 = vpop.f32.mrb[0].mxu0
    %v1438 = vpop.f32.mrb[0].mxu0
    %v1439 = vadd.f32 0.0, %v1438
    %v1440 = vpop.f32.mrb[0].mxu0
    %1441 = vdwg.mxu0
    %v1442 = vadd.f32 %v1205, %v1380
    %v1443 = vadd.f32 %v1206, %v1383
    %v1444 = vadd.f32 %v1207, %v1388
    %v1445 = vadd.f32 %v1208, %v1391
    %v1446 = vadd.f32 %v1209, %v1396
    %v1447 = vadd.f32 %v1210, %v1399
    %v1448 = vadd.f32 %v1211, %v1404
    %v1449 = vadd.f32 %v1212, %v1407
    %v1450 = vadd.f32 %v1213, %v1412
    %v1451 = vadd.f32 %v1214, %v1415
    %v1452 = vadd.f32 %v1215, %v1420
    %v1453 = vadd.f32 %v1216, %v1423
    %v1454 = vadd.f32 %v1217, %v1428
    %v1455 = vadd.f32 %v1218, %v1431
    %v1456 = vadd.f32 %v1219, %v1436
    %v1457 = vadd.f32 %v1220, %v1439
    %v1458 = vld [vmem:[#allocation8] sm:$0xff]
    %v1459 = vld [vmem:[#allocation8 + $0x8] sm:$0xff]
    %v1460 = vadd.f32 %v1442, %v1458
    %v1461 = vadd.f32 %v1443, %v1459
    %v1462 = vadd.f32 %v1444, %v1458
    %v1463 = vadd.f32 %v1445, %v1459
    %v1464 = vadd.f32 %v1446, %v1458
    %v1465 = vadd.f32 %v1447, %v1459
    %v1466 = vadd.f32 %v1448, %v1458
    %v1467 = vadd.f32 %v1449, %v1459
    %v1468 = vadd.f32 %v1450, %v1458
    %v1469 = vadd.f32 %v1451, %v1459
    %v1470 = vadd.f32 %v1452, %v1458
    %v1471 = vadd.f32 %v1453, %v1459
    %v1472 = vadd.f32 %v1454, %v1458
    %v1473 = vadd.f32 %v1455, %v1459
    %v1474 = vadd.f32 %v1456, %v1458
    %v1475 = vadd.f32 %v1457, %v1459
    %v1476 = vmax.f32 %v1460, %v1461
    %v1477 = vrot.slane %v1476, 4
    %v1478 = vmax.f32 %v1476, %v1477
    %v1479 = vrot.slane %v1478, 2
    %v1480 = vmax.f32 %v1478, %v1479
    %v1481 = vrot.slane %v1480, 1
    %v1482 = vmax.f32 %v1480, %v1481
    %v1483 = vmax.f32 %v1462, %v1463
    %v1484 = vrot.slane %v1483, 4
    %v1485 = vmax.f32 %v1483, %v1484
    %v1486 = vrot.slane %v1485, 2
    %v1487 = vmax.f32 %v1485, %v1486
    %v1488 = vrot.slane %v1487, 1
    %v1489 = vmax.f32 %v1487, %v1488
    %v1490 = vmax.f32 %v1464, %v1465
    %v1491 = vrot.slane %v1490, 4
    %v1492 = vmax.f32 %v1490, %v1491
    %v1493 = vrot.slane %v1492, 2
    %v1494 = vmax.f32 %v1492, %v1493
    %v1495 = vrot.slane %v1494, 1
    %v1496 = vmax.f32 %v1494, %v1495
    %v1497 = vmax.f32 %v1466, %v1467
    %v1498 = vrot.slane %v1497, 4
    %v1499 = vmax.f32 %v1497, %v1498
    %v1500 = vrot.slane %v1499, 2
    %v1501 = vmax.f32 %v1499, %v1500
    %v1502 = vrot.slane %v1501, 1
    %v1503 = vmax.f32 %v1501, %v1502
    %v1504 = vmax.f32 %v1468, %v1469
    %v1505 = vrot.slane %v1504, 4
    %v1506 = vmax.f32 %v1504, %v1505
    %v1507 = vrot.slane %v1506, 2
    %v1508 = vmax.f32 %v1506, %v1507
    %v1509 = vrot.slane %v1508, 1
    %v1510 = vmax.f32 %v1508, %v1509
    %v1511 = vmax.f32 %v1470, %v1471
    %v1512 = vrot.slane %v1511, 4
    %v1513 = vmax.f32 %v1511, %v1512
    %v1514 = vrot.slane %v1513, 2
    %v1515 = vmax.f32 %v1513, %v1514
    %v1516 = vrot.slane %v1515, 1
    %v1517 = vmax.f32 %v1515, %v1516
    %v1518 = vmax.f32 %v1472, %v1473
    %v1519 = vrot.slane %v1518, 4
    %v1520 = vmax.f32 %v1518, %v1519
    %v1521 = vrot.slane %v1520, 2
    %v1522 = vmax.f32 %v1520, %v1521
    %v1523 = vrot.slane %v1522, 1
    %v1524 = vmax.f32 %v1522, %v1523
    %v1525 = vmax.f32 %v1474, %v1475
    %v1526 = vrot.slane %v1525, 4
    %v1527 = vmax.f32 %v1525, %v1526
    %v1528 = vrot.slane %v1527, 2
    %v1529 = vmax.f32 %v1527, %v1528
    %v1530 = vrot.slane %v1529, 1
    %v1531 = vmax.f32 %v1529, %v1530
    %p1532 = scmp.eq.s32.totalorder 0, 0
    // Predicated region
    $region62: #{tpu_custom_call.1} parent=1 // pred_check
      %p1533 = pneg %p1532
    $region63: #{tpu_custom_call.1} parent=1 // pred_check_branch
      %1535 = sbr.rel (%p1533) target = $region65
    $region64: #{tpu_custom_call.1} parent=1 // pred_region
      %1536 = vst [vmem:[#allocation2] sm:$0xff] -1e+30
    $region65: #{tpu_custom_call.1} parent=1 // pred_fallthru
      _
    %v1537 = vld [vmem:[#allocation2] sm:$0xff]
    %vm1546 = vcmask 1041409
    %v1547 = vsel %vm1546, %v1489, %v1482
    %vm1548 = vcmask 1042434
    %v1549 = vsel %vm1548, %v1496, %v1547
    %vm1550 = vcmask 1043459
    %v1551 = vsel %vm1550, %v1503, %v1549
    %vm1552 = vcmask 1044484
    %v1553 = vsel %vm1552, %v1510, %v1551
    %vm1554 = vcmask 1045509
    %v1555 = vsel %vm1554, %v1517, %v1553
    %vm1556 = vcmask 1046534
    %v1557 = vsel %vm1556, %v1524, %v1555
    %vm1558 = vcmask 1047559
    %v1559 = vsel %vm1558, %v1531, %v1557
    %v1561 = vmax.f32 %v1537, %v1559
    %1562 = vst [vmem:[#allocation2] sm:$0xff] %v1561
    // Predicated region
    $region66: #{tpu_custom_call.1} parent=1 // pred_check
      %p1563 = pneg %p1532
    $region67: #{tpu_custom_call.1} parent=1 // pred_check_branch
      %1565 = sbr.rel (%p1563) target = $region69
    $region68: #{tpu_custom_call.1} parent=1 // pred_region
      %v1566 = vld [vmem:[#allocation2] sm:$0xff]
      %v1567 = vmax.f32 %v1566, 0.0
      %v1568 = vpack.c.bf16 %v1567, %v1567
      %v1569 = vld [vmem:[#allocation9] sm:$0xf]
      %v1570 = vld [vmem:[#allocation9 + $0x4] sm:$0xf]
      %v1571 = vld [vmem:[#allocation9 + $0x8] sm:$0xf]
      %v1572 = vld [vmem:[#allocation9 + $0xc] sm:$0xf]
      %v1573 = vld [vmem:[#allocation9 + $0x10] sm:$0xf]
      %v1574 = vld [vmem:[#allocation9 + $0x14] sm:$0xf]
      %v1575 = vld [vmem:[#allocation9 + $0x18] sm:$0xf]
      %v1576 = vld [vmem:[#allocation9 + $0x1c] sm:$0xf]
      %v1577 = vld [vmem:[#allocation9 + $0x20] sm:$0xf]
      %v1578 = vld [vmem:[#allocation9 + $0x24] sm:$0xf]
      %v1579 = vld [vmem:[#allocation9 + $0x28] sm:$0xf]
      %v1580 = vld [vmem:[#allocation9 + $0x2c] sm:$0xf]
      %v1581 = vld [vmem:[#allocation9 + $0x30] sm:$0xf]
      %v1582 = vld [vmem:[#allocation9 + $0x34] sm:$0xf]
      %v1583 = vld [vmem:[#allocation9 + $0x38] sm:$0xf]
      %v1584 = vld [vmem:[#allocation9 + $0x3c] sm:$0xf]
      %v1585 = vld [vmem:[%s4] sm:$0x1]
      %v1587 = vlaneseq
      %v1588 = vshrl.u32 %v1587, 7
      %v1589 = vsub.s32 0, %v1588
      %v1590 = vrot.slane %v1585, %v1589
      %v1608 = vunpack.c.l.b16 %v1569
      %v1609 = vunpack.c.l.b16 %v1570
      %v1610 = vunpack.c.l.b16 %v1571
      %v1611 = vunpack.c.l.b16 %v1572
      %v1612 = vunpack.c.l.b16 %v1573
      %v1613 = vunpack.c.l.b16 %v1574
      %v1614 = vunpack.c.l.b16 %v1575
      %v1615 = vunpack.c.l.b16 %v1576
      %v1616 = vunpack.c.l.b16 %v1577
      %v1617 = vunpack.c.l.b16 %v1578
      %v1618 = vunpack.c.l.b16 %v1579
      %v1619 = vunpack.c.l.b16 %v1580
      %v1620 = vunpack.c.l.b16 %v1581
      %v1621 = vunpack.c.l.b16 %v1582
      %v1622 = vunpack.c.l.b16 %v1583
      %v1623 = vunpack.c.l.b16 %v1584
      %v1624 = vpack.c.b16 %v1609, %v1608
      %v1625 = vpack.c.b16 %v1611, %v1610
      %v1626 = vpack.c.b16 %v1613, %v1612
      %v1627 = vpack.c.b16 %v1615, %v1614
      %v1628 = vpack.c.b16 %v1617, %v1616
      %v1629 = vpack.c.b16 %v1619, %v1618
      %v1630 = vpack.c.b16 %v1621, %v1620
      %v1631 = vpack.c.b16 %v1623, %v1622
      %1640 = vmatprep.subr.bf16.mxu0 0
      %1641 = vmatpush1.bf16.msra.mxu0 %v1624
      %1642 = vmatprep.subr.bf16.mxu0 0
      %1643 = vmatpush1.bf16.msra.mxu0 %v1625
      %1644 = vmatprep.subr.bf16.mxu0 0
      %1645 = vmatpush1.bf16.msra.mxu0 %v1626
      %1646 = vmatprep.subr.bf16.mxu0 0
      %1647 = vmatpush1.bf16.msra.mxu0 %v1627
      %1648 = vmatprep.subr.bf16.mxu0 0
      %1649 = vmatpush1.bf16.msra.mxu0 %v1628
      %1650 = vmatprep.subr.bf16.mxu0 0
      %1651 = vmatpush1.bf16.msra.mxu0 %v1629
      %1652 = vmatprep.subr.bf16.mxu0 0
      %1653 = vmatpush1.bf16.msra.mxu0 %v1630
      %1654 = vmatprep.subr.bf16.mxu0 0
      %1655 = vmatpush1.bf16.msra.mxu0 %v1631
      %1656 = vmatprep.subr.bf16.mxu0 0
      %1657 = vmatpush1.bf16.msra.mxu0 0
      %1658 = vmatprep.subr.bf16.mxu0 0
      %1659 = vmatpush1.bf16.msra.mxu0 0
      %1660 = vmatprep.subr.bf16.mxu0 0
      %1661 = vmatpush1.bf16.msra.mxu0 0
      %1662 = vmatprep.subr.bf16.mxu0 0
      %1663 = vmatpush1.bf16.msra.mxu0 0
      %1664 = vmatprep.subr.bf16.mxu0 0
      %1665 = vmatpush1.bf16.msra.mxu0 0
      %1666 = vmatprep.subr.bf16.mxu0 0
      %1667 = vmatpush1.bf16.msra.mxu0 0
      %1668 = vmatprep.subr.bf16.mxu0 0
      %1669 = vmatpush1.bf16.msra.mxu0 0
      %1670 = vmatprep.subr.bf16.mxu0 0
      %1671 = vmatpush1.bf16.msra.mxu0 0
      %1672 = vmatprep.mubr.bf16.mxu0 0
      %1673 = vmatmul.mubr.bf16.gmra.mrb[0].mxu0 %v1568
      %v1674 = vpop.f32.mrb[0].mxu0
      %v1675 = vadd.f32 %v1590, %v1674
      %v1676 = vpop.f32.mrb[0].mxu0
      %v1677 = vpop.f32.mrb[0].mxu0
      %v1678 = vpop.f32.mrb[0].mxu0
      %1679 = vdwg.mxu0
      %v1680 = vmax.f32 %v1675, 0.0
      %v1681 = vpack.c.bf16 %v1680, %v1680
      %v1682 = vld [vmem:[#allocation11] sm:$0xf]
      %v1683 = vld [vmem:[#allocation11 + $0x4] sm:$0xf]
      %v1684 = vld [vmem:[#allocation11 + $0x8] sm:$0xf]
      %v1685 = vld [vmem:[#allocation11 + $0xc] sm:$0xf]
      %v1686 = vld [vmem:[#allocation11 + $0x10] sm:$0xf]
      %v1687 = vld [vmem:[#allocation11 + $0x14] sm:$0xf]
      %v1688 = vld [vmem:[#allocation11 + $0x18] sm:$0xf]
      %v1689 = vld [vmem:[#allocation11 + $0x1c] sm:$0xf]
      %v1690 = vld [vmem:[#allocation11 + $0x20] sm:$0xf]
      %v1691 = vld [vmem:[#allocation11 + $0x24] sm:$0xf]
      %v1692 = vld [vmem:[#allocation11 + $0x28] sm:$0xf]
      %v1693 = vld [vmem:[#allocation11 + $0x2c] sm:$0xf]
      %v1694 = vld [vmem:[#allocation11 + $0x30] sm:$0xf]
      %v1695 = vld [vmem:[#allocation11 + $0x34] sm:$0xf]
      %v1696 = vld [vmem:[#allocation11 + $0x38] sm:$0xf]
      %v1697 = vld [vmem:[#allocation11 + $0x3c] sm:$0xf]
      %v1698 = vld [vmem:[%s6] sm:$0x1]
      %v1700 = vlaneseq
      %v1701 = vshrl.u32 %v1700, 7
      %v1702 = vsub.s32 0, %v1701
      %v1703 = vrot.slane %v1698, %v1702
      %v1721 = vunpack.c.l.b16 %v1682
      %v1722 = vunpack.c.l.b16 %v1683
      %v1723 = vunpack.c.l.b16 %v1684
      %v1724 = vunpack.c.l.b16 %v1685
      %v1725 = vunpack.c.l.b16 %v1686
      %v1726 = vunpack.c.l.b16 %v1687
      %v1727 = vunpack.c.l.b16 %v1688
      %v1728 = vunpack.c.l.b16 %v1689
      %v1729 = vunpack.c.l.b16 %v1690
      %v1730 = vunpack.c.l.b16 %v1691
      %v1731 = vunpack.c.l.b16 %v1692
      %v1732 = vunpack.c.l.b16 %v1693
      %v1733 = vunpack.c.l.b16 %v1694
      %v1734 = vunpack.c.l.b16 %v1695
      %v1735 = vunpack.c.l.b16 %v1696
      %v1736 = vunpack.c.l.b16 %v1697
      %v1737 = vpack.c.b16 %v1722, %v1721
      %v1738 = vpack.c.b16 %v1724, %v1723
      %v1739 = vpack.c.b16 %v1726, %v1725
      %v1740 = vpack.c.b16 %v1728, %v1727
      %v1741 = vpack.c.b16 %v1730, %v1729
      %v1742 = vpack.c.b16 %v1732, %v1731
      %v1743 = vpack.c.b16 %v1734, %v1733
      %v1744 = vpack.c.b16 %v1736, %v1735
      %1753 = vmatprep.subr.bf16.mxu0 0
      %1754 = vmatpush1.bf16.msra.mxu0 %v1737
      %1755 = vmatprep.subr.bf16.mxu0 0
      %1756 = vmatpush1.bf16.msra.mxu0 %v1738
      %1757 = vmatprep.subr.bf16.mxu0 0
      %1758 = vmatpush1.bf16.msra.mxu0 %v1739
      %1759 = vmatprep.subr.bf16.mxu0 0
      %1760 = vmatpush1.bf16.msra.mxu0 %v1740
      %1761 = vmatprep.subr.bf16.mxu0 0
      %1762 = vmatpush1.bf16.msra.mxu0 %v1741
      %1763 = vmatprep.subr.bf16.mxu0 0
      %1764 = vmatpush1.bf16.msra.mxu0 %v1742
      %1765 = vmatprep.subr.bf16.mxu0 0
      %1766 = vmatpush1.bf16.msra.mxu0 %v1743
      %1767 = vmatprep.subr.bf16.mxu0 0
      %1768 = vmatpush1.bf16.msra.mxu0 %v1744
      %1769 = vmatprep.subr.bf16.mxu0 0
      %1770 = vmatpush1.bf16.msra.mxu0 0
      %1771 = vmatprep.subr.bf16.mxu0 0
      %1772 = vmatpush1.bf16.msra.mxu0 0
      %1773 = vmatprep.subr.bf16.mxu0 0
      %1774 = vmatpush1.bf16.msra.mxu0 0
      %1775 = vmatprep.subr.bf16.mxu0 0
      %1776 = vmatpush1.bf16.msra.mxu0 0
      %1777 = vmatprep.subr.bf16.mxu0 0
      %1778 = vmatpush1.bf16.msra.mxu0 0
      %1779 = vmatprep.subr.bf16.mxu0 0
      %1780 = vmatpush1.bf16.msra.mxu0 0
      %1781 = vmatprep.subr.bf16.mxu0 0
      %1782 = vmatpush1.bf16.msra.mxu0 0
      %1783 = vmatprep.subr.bf16.mxu0 0
      %1784 = vmatpush1.bf16.msra.mxu0 0
      %1785 = vmatprep.mubr.bf16.mxu0 0
      %1786 = vmatmul.mubr.bf16.gmra.mrb[0].mxu0 %v1681
      %v1787 = vpop.f32.mrb[0].mxu0
      %v1788 = vadd.f32 %v1703, %v1787
      %v1789 = vpop.f32.mrb[0].mxu0
      %v1790 = vpop.f32.mrb[0].mxu0
      %v1791 = vpop.f32.mrb[0].mxu0
      %1792 = vdwg.mxu0
      %v1793 = vmax.f32 %v1788, 0.0
      %v1794 = vpack.c.bf16 %v1793, %v1793
      %v1795 = vld [vmem:[#allocation12] sm:$0xf]
      %v1796 = vld [vmem:[#allocation12 + $0x4] sm:$0xf]
      %v1797 = vld [vmem:[#allocation12 + $0x8] sm:$0xf]
      %v1798 = vld [vmem:[#allocation12 + $0xc] sm:$0xf]
      %v1799 = vld [vmem:[#allocation12 + $0x10] sm:$0xf]
      %v1800 = vld [vmem:[#allocation12 + $0x14] sm:$0xf]
      %v1801 = vld [vmem:[#allocation12 + $0x18] sm:$0xf]
      %v1802 = vld [vmem:[#allocation12 + $0x1c] sm:$0xf]
      %v1803 = vld [vmem:[#allocation12 + $0x20] sm:$0xf]
      %v1804 = vld [vmem:[#allocation12 + $0x24] sm:$0xf]
      %v1805 = vld [vmem:[#allocation12 + $0x28] sm:$0xf]
      %v1806 = vld [vmem:[#allocation12 + $0x2c] sm:$0xf]
      %v1807 = vld [vmem:[#allocation12 + $0x30] sm:$0xf]
      %v1808 = vld [vmem:[#allocation12 + $0x34] sm:$0xf]
      %v1809 = vld [vmem:[#allocation12 + $0x38] sm:$0xf]
      %v1810 = vld [vmem:[#allocation12 + $0x3c] sm:$0xf]
      %v1811 = vld [vmem:[%s8] sm:$0x1]
      %v1813 = vlaneseq
      %v1814 = vshrl.u32 %v1813, 7
      %v1815 = vsub.s32 0, %v1814
      %v1816 = vrot.slane %v1811, %v1815
      %v1834 = vunpack.c.l.b16 %v1795
      %v1835 = vunpack.c.l.b16 %v1796
      %v1836 = vunpack.c.l.b16 %v1797
      %v1837 = vunpack.c.l.b16 %v1798
      %v1838 = vunpack.c.l.b16 %v1799
      %v1839 = vunpack.c.l.b16 %v1800
      %v1840 = vunpack.c.l.b16 %v1801
      %v1841 = vunpack.c.l.b16 %v1802
      %v1842 = vunpack.c.l.b16 %v1803
      %v1843 = vunpack.c.l.b16 %v1804
      %v1844 = vunpack.c.l.b16 %v1805
      %v1845 = vunpack.c.l.b16 %v1806
      %v1846 = vunpack.c.l.b16 %v1807
      %v1847 = vunpack.c.l.b16 %v1808
      %v1848 = vunpack.c.l.b16 %v1809
      %v1849 = vunpack.c.l.b16 %v1810
      %v1850 = vpack.c.b16 %v1835, %v1834
      %v1851 = vpack.c.b16 %v1837, %v1836
      %v1852 = vpack.c.b16 %v1839, %v1838
      %v1853 = vpack.c.b16 %v1841, %v1840
      %v1854 = vpack.c.b16 %v1843, %v1842
      %v1855 = vpack.c.b16 %v1845, %v1844
      %v1856 = vpack.c.b16 %v1847, %v1846
      %v1857 = vpack.c.b16 %v1849, %v1848
      %1866 = vmatprep.subr.bf16.mxu0 0
      %1867 = vmatpush1.bf16.msra.mxu0 %v1850
      %1868 = vmatprep.subr.bf16.mxu0 0
      %1869 = vmatpush1.bf16.msra.mxu0 %v1851
      %1870 = vmatprep.subr.bf16.mxu0 0
      %1871 = vmatpush1.bf16.msra.mxu0 %v1852
      %1872 = vmatprep.subr.bf16.mxu0 0
      %1873 = vmatpush1.bf16.msra.mxu0 %v1853
      %1874 = vmatprep.subr.bf16.mxu0 0
      %1875 = vmatpush1.bf16.msra.mxu0 %v1854
      %1876 = vmatprep.subr.bf16.mxu0 0
      %1877 = vmatpush1.bf16.msra.mxu0 %v1855
      %1878 = vmatprep.subr.bf16.mxu0 0
      %1879 = vmatpush1.bf16.msra.mxu0 %v1856
      %1880 = vmatprep.subr.bf16.mxu0 0
      %1881 = vmatpush1.bf16.msra.mxu0 %v1857
      %1882 = vmatprep.subr.bf16.mxu0 0
      %1883 = vmatpush1.bf16.msra.mxu0 0
      %1884 = vmatprep.subr.bf16.mxu0 0
      %1885 = vmatpush1.bf16.msra.mxu0 0
      %1886 = vmatprep.subr.bf16.mxu0 0
      %1887 = vmatpush1.bf16.msra.mxu0 0
      %1888 = vmatprep.subr.bf16.mxu0 0
      %1889 = vmatpush1.bf16.msra.mxu0 0
      %1890 = vmatprep.subr.bf16.mxu0 0
      %1891 = vmatpush1.bf16.msra.mxu0 0
      %1892 = vmatprep.subr.bf16.mxu0 0
      %1893 = vmatpush1.bf16.msra.mxu0 0
      %1894 = vmatprep.subr.bf16.mxu0 0
      %1895 = vmatpush1.bf16.msra.mxu0 0
      %1896 = vmatprep.subr.bf16.mxu0 0
      %1897 = vmatpush1.bf16.msra.mxu0 0
      %1898 = vmatprep.mubr.bf16.mxu0 0
      %1899 = vmatmul.mubr.bf16.gmra.mrb[0].mxu0 %v1794
      %v1900 = vpop.f32.mrb[0].mxu0
      %v1901 = vadd.f32 %v1816, %v1900
      %v1902 = vpop.f32.mrb[0].mxu0
      %v1903 = vpop.f32.mrb[0].mxu0
      %v1904 = vpop.f32.mrb[0].mxu0
      %1905 = vdwg.mxu0
      %1906 = vst [vmem:[#allocation14] sm:$0xff] %v1901
    $region69: #{tpu_custom_call.1} parent=1 // pred_fallthru
      _
    // Predicated region
    $region70: #{tpu_custom_call.1} parent=1 // pred_check
      _
    $region71: #{tpu_custom_call.1} parent=1 // pred_check_branch
      %1908 = sbr.rel (0) target = $region73
    $region72: #{tpu_custom_call.1} parent=1 // pred_region
      %s1910 = ssub.s32 128, 128
      %1911 = vsyncadd [#allocation5], %s1910
      %s1913 = sshll.u32 [#allocation14], 4
      %s1914 = int_to_ptr.vmem [resolvable:$true] %s1913
      %1916 = dma.vmem_to_hbm [thread:$0]  %s1914, 128, %s9, [#allocation5]
    $region73: #{tpu_custom_call.1} parent=1 // pred_fallthru
      _
    // Predicated region
    $region74: #{tpu_custom_call.1} parent=1 // pred_check
      _
    $region75: #{tpu_custom_call.1} parent=1 // pred_check_branch
      %1918 = sbr.rel (0) target = $region77
    $region76: #{tpu_custom_call.1} parent=1 // pred_region
      %1919 = dma.done [#allocation5], 128
    $region77: #{tpu_custom_call.1} parent=1 // pred_fallthru
      _
    %1920 = vsyncpa [#allocation4], 1
    %1921 = vsyncpa [#allocation7], 1
    %1922 = vsyncpa [#allocation10], 1
    %1923 = vsyncpa [#allocation13], 1
    %1924 = vsyncpa [#allocation5], 1

</llo_original>
